<compile_context>
chip_gen: v6e
topology: v6e:2x2x1
jax: 0.10.0
libtpu: 0.0.40
codegen_flags: <defaults>
</compile_context>

<pallas_src>
import functools

import jax
import jax.numpy as jnp
from jax.experimental import pallas as pl
from jax.experimental.pallas import tpu as pltpu


def _round_up(x, m):
    return (x + m - 1) // m * m


def _pad_hidden(h):
    # Lane alignment (128) always; full 256-wide MXU tiles (v6e/v7x) once H is
    # large enough that the extra padding is cheap.
    return _round_up(h, 128) if h <= 128 else _round_up(h, 256)


# --------------------------------------------------------------------------- #
# Kernel bodies
# --------------------------------------------------------------------------- #
def _gru_cell(x_mm, h_mm, h_f32, wx, wh, bx, bhn, H):
    """One GRU step on a [TB, Hp] tile (math exactly as in the PyTorch module).

    x_mm, h_mm : activations in the matmul dtype (bf16 fast path / f32 path)
    h_f32      : f32 previous hidden state (for the blend)
    wx, wh     : [Dp, 3*Hp] fused (r | z | n) weights, pre-transposed
    bx         : [1, 3*Hp]  f32 folded biases (b_ir+b_hr | b_iz+b_hz | b_in)
    bhn        : [1, Hp]    f32 b_hn
    """
    # Two wide MXU GEMMs (f32 accumulation) instead of six narrow ones.
    gx = jnp.dot(x_mm, wx, preferred_element_type=jnp.float32) + bx
    gh = jnp.dot(h_mm, wh, preferred_element_type=jnp.float32)

    # r and z share a single add + sigmoid pass over a lane-aligned [TB, 2H] slab.
    rz = jax.nn.sigmoid(gx[:, :2 * H] + gh[:, :2 * H])
    rt = rz[:, :H]
    zt = rz[:, H:]

    n_inp = gx[:, 2 * H:] + rt                      # (sic) rt is ADDED, not gated
    n_hid = gh[:, 2 * H:] + bhn
    nt = jnp.tanh(n_inp * n_hid)

    # (1 - zt) * nt + zt * h   ==   nt + zt * (h - nt)   (one fewer VPU pass)
    return nt + zt * (h_f32 - nt)


def gru_step_kernel(x_ref, h_ref, wx_ref, wh_ref, bx_ref, bhn_ref, out_ref, *, hidden):
    """Single fused GRU step for one batch tile."""
    mm = wx_ref.dtype
    h_f32 = h_ref[...].astype(jnp.float32)
    ht = _gru_cell(x_ref[...].astype(mm), h_ref[...].astype(mm), h_f32,
                   wx_ref[...], wh_ref[...],
                   bx_ref[...].astype(jnp.float32), bhn_ref[...].astype(jnp.float32),
                   hidden)
    out_ref[...] = ht.astype(out_ref.dtype)


def gru_seq_kernel(x_ref, h0_ref, wx_ref, wh_ref, bx_ref, bhn_ref, out_ref,
                   h_state, *, hidden):
    """Time loop fused into the kernel: grid = (batch tiles, T).

    Weights stay VMEM-resident across all T steps (constant index_map); the
    recurrent state lives in a persistent f32 VMEM scratch.
    """
    @pl.when(pl.program_id(1) == 0)
    def _():
        h_state[...] = h0_ref[...].astype(jnp.float32)

    mm = wx_ref.dtype
    h_f32 = h_state[...]
    ht = _gru_cell(x_ref[0].astype(mm), h_f32.astype(mm), h_f32,
                   wx_ref[...], wh_ref[...],
                   bx_ref[...].astype(jnp.float32), bhn_ref[...].astype(jnp.float32),
                   hidden)
    h_state[...] = ht
    out_ref[0] = ht.astype(out_ref.dtype)


# --------------------------------------------------------------------------- #
# Parameter prep (once, at init) and wrappers
# --------------------------------------------------------------------------- #
def prepare_params(params, *, matmul_dtype=jnp.bfloat16):
    """Fuse / pre-transpose / bias-fold / lane-pad the six Linear layers once."""
    H, D = params["w_ir"].shape
    assert D == H, "module requires input_size == hidden_size"
    Hp = _pad_hidden(H)
    Dp = Hp

    def padw(w):   # [H, D] (PyTorch layout) -> [Dp, Hp], pre-transposed: x @ W
        wt = w.T.astype(matmul_dtype)
        return jnp.pad(wt, ((0, Dp - D), (0, Hp - H)))

    def padb(b):
        return jnp.pad(b.astype(jnp.float32), (0, Hp - H)).reshape(1, Hp)

    wx = jnp.concatenate([padw(params["w_ir"]), padw(params["w_iz"]), padw(params["w_in"])], axis=1)
    wh = jnp.concatenate([padw(params["w_hr"]), padw(params["w_hz"]), padw(params["w_hn"])], axis=1)
    bx = jnp.concatenate([padb(params["b_ir"] + params["b_hr"]),
                          padb(params["b_iz"] + params["b_hz"]),
                          padb(params["b_in"])], axis=1)
    bhn = padb(params["b_hn"])
    return {"wx": wx, "wh": wh, "bx": bx, "bhn": bhn, "H": H, "Hp": Hp}


def _pick_batch_tile(B, batch_tile):
    if batch_tile is not None:
        return max(8, _round_up(batch_tile, 8))     # respect the (8, 128) constraint
    Bp8 = _round_up(B, 8)
    TB = min(256, Bp8)
    # Give both v7x TensorCores work on the "parallel" batch axis when B allows.
    if Bp8 // TB < 2 and Bp8 >= 16:
        TB = max(8, (Bp8 // 2) // 8 * 8)
    return TB


def _vmem_limit_bytes(need):
    try:
        phys = pltpu.get_tpu_info().vmem_capacity_bytes
    except Exception:
        phys = 64 << 20                             # conservative: v7x per-TC VMEM
    cap = phys - (4 << 20)                          # headroom for compiler internals
    # TODO(synk): if the fused weights alone exceed `cap` (very large H), stream
    # them with a K-reduction / gate-interleaved-N grid axis instead of keeping
    # them fully resident.
    return int(min(max(need + (8 << 20), 32 << 20), cap))


def _const_spec(shape, single_buffer):
    # Block index never changes -> fetched once and kept resident. Request
    # single buffering to halve its resident VMEM (default pipeline allocates 2).
    idx = lambda *_: (0,) * len(shape)
    if single_buffer:
        return pl.BlockSpec(shape, idx, pipeline_mode=pl.Buffered(1))
    return pl.BlockSpec(shape, idx)


def gru_forward(x, h, prepped, *, batch_tile=None):
    """Single GRU step. x, h: [B, H] float32. Returns (out, hidden) == (ht, ht)."""
    B, D = x.shape
    H, Hp = prepped["H"], prepped["Hp"]
    assert h.shape == (B, H) and D == H, "module requires input_size == hidden_size"
    wx, wh, bx, bhn = prepped["wx"], prepped["wh"], prepped["bx"], prepped["bhn"]
    mm_dtype = wx.dtype

    TB = _pick_batch_tile(B, batch_tile)
    Bp = _round_up(B, TB)

    # Lane/sublane-dense padding; activations travel in the matmul dtype
    # (halves activation DMA on the bf16 fast path).
    xp = jnp.pad(x, ((0, Bp - B), (0, Hp - D))).astype(mm_dtype)
    hp = jnp.pad(h, ((0, Bp - B), (0, Hp - H))).astype(mm_dtype)

    grid = (Bp // TB,)
    w_bytes = (wx.size + wh.size) * wx.dtype.itemsize
    act_item = wx.dtype.itemsize

    def run(single_buffer):
        need = ((1 if single_buffer else 2) * w_bytes
                + 2 * 3 * TB * Hp * max(act_item, 4)        # x / h / out double-buffered
                + 2 * TB * 3 * Hp * 4 + 4 * TB * Hp * 4)    # f32 gx/gh + epilogue temps
        cp = pltpu.CompilerParams(
            dimension_semantics=("parallel",),
            vmem_limit_bytes=_vmem_limit_bytes(need))
        cost = pl.CostEstimate(
            flops=int(2 * 2 * Bp * Hp * 3 * Hp + 10 * Bp * Hp),
            transcendentals=int(3 * Bp * Hp),
            bytes_accessed=int(w_bytes + (bx.size + bhn.size) * 4
                               + (xp.size + hp.size) * act_item + Bp * Hp * 4))
        return pl.pallas_call(
            functools.partial(gru_step_kernel, hidden=Hp),
            grid=grid,
            in_specs=[
                pl.BlockSpec((TB, Hp), lambda i: (i, 0)),     # x tile (pipelined)
                pl.BlockSpec((TB, Hp), lambda i: (i, 0)),     # h tile
                _const_spec((Hp, 3 * Hp), single_buffer),     # fused input weights
                _const_spec((Hp, 3 * Hp), single_buffer),     # fused hidden weights
                _const_spec((1, 3 * Hp), single_buffer),      # folded biases
                _const_spec((1, Hp), single_buffer),          # b_hn
            ],
            out_specs=pl.BlockSpec((TB, Hp), lambda i: (i, 0)),
            out_shape=jax.ShapeDtypeStruct((Bp, Hp), jnp.float32),
            compiler_params=cp,
            cost_estimate=cost,
        )(xp, hp, wx, wh, bx, bhn)

    try:
        out = run(True)
    except Exception:
        # pl.Buffered(1) pipeline_mode unsupported on this JAX -> default buffering.
        out = run(False)

    ht = out[:B, :H]
    return ht, ht   # the PyTorch module returns the same tensor twice


def gru_sequence(xs, h0, prepped, *, batch_tile=None):
    """Apply the GRU cell over a sequence with the time loop fused in-kernel.

    xs: [T, B, H], h0: [B, H]. Returns (outs [T, B, H], h_T [B, H]).
    Weights are DMA'd to VMEM once and reused for all T steps.
    """
    T, B, D = xs.shape
    H, Hp = prepped["H"], prepped["Hp"]
    assert h0.shape == (B, H) and D == H, "module requires input_size == hidden_size"
    wx, wh, bx, bhn = prepped["wx"], prepped["wh"], prepped["bx"], prepped["bhn"]
    mm_dtype = wx.dtype

    TB = _pick_batch_tile(B, batch_tile)
    Bp = _round_up(B, TB)

    xp = jnp.pad(xs, ((0, 0), (0, Bp - B), (0, Hp - D))).astype(mm_dtype)
    hp = jnp.pad(h0, ((0, Bp - B), (0, Hp - H))).astype(mm_dtype)

    grid = (Bp // TB, T)       # batch tiles (parallel) x time (arbitrary, in order)
    w_bytes = (wx.size + wh.size) * wx.dtype.itemsize
    act_item = wx.dtype.itemsize

    def run(single_buffer):
        need = ((1 if single_buffer else 2) * w_bytes
                + 2 * 3 * TB * Hp * max(act_item, 4)
                + TB * Hp * 4                                # persistent h scratch
                + 2 * TB * 3 * Hp * 4 + 4 * TB * Hp * 4)
        cp = pltpu.CompilerParams(
            dimension_semantics=("parallel", "arbitrary"),
            vmem_limit_bytes=_vmem_limit_bytes(need))
        cost = pl.CostEstimate(
            flops=int(T * (2 * 2 * Bp * Hp * 3 * Hp + 10 * Bp * Hp)),
            transcendentals=int(T * 3 * Bp * Hp),
            bytes_accessed=int(w_bytes + (bx.size + bhn.size) * 4
                               + (xp.size + hp.size) * act_item + T * Bp * Hp * 4))
        return pl.pallas_call(
            functools.partial(gru_seq_kernel, hidden=Hp),
            grid=grid,
            in_specs=[
                pl.BlockSpec((1, TB, Hp), lambda i, t: (t, i, 0)),   # x_t tile
                pl.BlockSpec((TB, Hp), lambda i, t: (i, 0)),         # h0 tile
                _const_spec((Hp, 3 * Hp), single_buffer),            # fused weights
                _const_spec((Hp, 3 * Hp), single_buffer),
                _const_spec((1, 3 * Hp), single_buffer),
                _const_spec((1, Hp), single_buffer),
            ],
            out_specs=pl.BlockSpec((1, TB, Hp), lambda i, t: (t, i, 0)),
            out_shape=jax.ShapeDtypeStruct((T, Bp, Hp), jnp.float32),
            scratch_shapes=[pltpu.VMEM((TB, Hp), jnp.float32)],      # recurrent state
            compiler_params=cp,
            cost_estimate=cost,
        )(xp, hp, wx, wh, bx, bhn)

    try:
        out = run(True)
    except Exception:
        out = run(False)

    outs = out[:, :B, :H]
    return outs, outs[-1]


# --------------------------------------------------------------------------- #
# Pure-JAX reference (matches the PyTorch forward exactly) and init
# --------------------------------------------------------------------------- #
def gru_reference(x, h, params):
    lin = lambda v, w, b: v @ params[w].T + params[b]
    rt = jax.nn.sigmoid(lin(x, "w_ir", "b_ir") + lin(h, "w_hr", "b_hr"))
    zt = jax.nn.sigmoid(lin(x, "w_iz", "b_iz") + lin(h, "w_hz", "b_hz"))
    n_inp = lin(x, "w_in", "b_in") + rt
    n_hid = lin(h, "w_hn", "b_hn")
    nt = jnp.tanh(n_inp * n_hid)
    ht = (1.0 - zt) * nt + zt * h
    return ht, ht


def init_params(key, input_size, hidden_size):
    # PyTorch nn.Linear default init: U(-1/sqrt(in), 1/sqrt(in)) for weight & bias.
    bound = 1.0 / (input_size ** 0.5)
    names = ("ir", "iz", "in", "hr", "hz", "hn")
    keys = jax.random.split(key, 2 * len(names))
    params = {}
    for i, n in enumerate(names):
        params[f"w_{n}"] = jax.random.uniform(
            keys[2 * i], (hidden_size, input_size), jnp.float32, -bound, bound)
        params[f"b_{n}"] = jax.random.uniform(
            keys[2 * i + 1], (hidden_size,), jnp.float32, -bound, bound)
    return params


if __name__ == "__main__":
    B = 2
    D = H = 32     # module requires input_size == hidden_size (see note above)
    T = 8

    key = jax.random.PRNGKey(0)
    kx, kh, kp, ks = jax.random.split(key, 4)
    x = jax.random.normal(kx, (B, D), jnp.float32)
    h = jax.random.normal(kh, (B, H), jnp.float32)
    xs = jax.random.normal(ks, (T, B, D), jnp.float32)
    params = init_params(kp, D, H)

    ref_out, ref_hid = gru_reference(x, h, params)

    # f32-matmul path. (Tolerance allows for different TPU matmul precision
    # modes between the in-kernel dot and the XLA reference.)
    prepped_f32 = prepare_params(params, matmul_dtype=jnp.float32)
    out32, hid32 = gru_forward(x, h, prepped_f32)
    jax.block_until_ready((out32, hid32))
    assert out32.shape == (B, H) and hid32.shape == (B, H)
    assert jnp.allclose(out32, ref_out, atol=2e-2, rtol=2e-2), "f32 step mismatch"
    assert jnp.allclose(hid32, ref_hid, atol=2e-2, rtol=2e-2), "f32 hidden mismatch"

    # bf16 fast path (default on v5e / v6e / v7x).
    prepped_bf16 = prepare_params(params)          # matmul_dtype = bfloat16
    out16, hid16 = gru_forward(x, h, prepped_bf16)
    jax.block_until_ready((out16, hid16))
    assert jnp.allclose(out16, ref_out, atol=5e-2, rtol=5e-2), "bf16 step mismatch"
    assert jnp.allclose(hid16, ref_hid, atol=5e-2, rtol=5e-2), "bf16 hidden mismatch"

    # Fused-sequence kernel vs. looping the single-step kernel (same precision,
    # so a tight tolerance validates the time-loop fusion itself).
    seq_out, seq_h = gru_sequence(xs, h, prepped_f32)
    jax.block_until_ready((seq_out, seq_h))
    h_loop = h
    for t in range(T):
        step_out, h_loop = gru_forward(xs[t], h_loop, prepped_f32)
        assert jnp.allclose(seq_out[t], step_out, atol=1e-4, rtol=1e-4), f"seq step {t} mismatch"
    assert jnp.allclose(seq_h, h_loop, atol=1e-4, rtol=1e-4), "seq final hidden mismatch"

    print("KERNEL_OK")
</pallas_src>

<mosaic_0001>
module attributes {stable_mosaic.version = 11 : i64} {
  func.func @gru_step_kernel(%arg0: i32, %arg1: memref<8x128xf32, #tpu.memory_space<vmem>>, %arg2: memref<8x128xf32, #tpu.memory_space<vmem>>, %arg3: memref<128x384xf32, #tpu.memory_space<vmem>>, %arg4: memref<128x384xf32, #tpu.memory_space<vmem>>, %arg5: memref<1x384xf32, #tpu.memory_space<vmem>>, %arg6: memref<1x128xf32, #tpu.memory_space<vmem>>, %arg7: memref<8x128xf32, #tpu.memory_space<vmem>>) attributes {dimension_semantics = [#tpu.dimension_semantics<parallel>], iteration_bounds = array<i64: 1>, scalar_prefetch = 0 : i64, scratch_operands = 0 : i64, tpu.core_type = #tpu.core_type<tc>, window_params = [{transform_indices = @transform_0, window_bounds = array<i64: 8, 128>}, {transform_indices = @transform_1, window_bounds = array<i64: 8, 128>}, {pipeline_mode = #tpu.pipeline_mode<synchronous>, transform_indices = @transform_2, window_bounds = array<i64: 128, 384>}, {pipeline_mode = #tpu.pipeline_mode<synchronous>, transform_indices = @transform_3, window_bounds = array<i64: 128, 384>}, {pipeline_mode = #tpu.pipeline_mode<synchronous>, transform_indices = @transform_4, window_bounds = array<i64: 1, 384>}, {pipeline_mode = #tpu.pipeline_mode<synchronous>, transform_indices = @transform_5, window_bounds = array<i64: 1, 128>}, {transform_indices = @transform_6, window_bounds = array<i64: 8, 128>}]} {
    %c0 = arith.constant 0 : index
    %c0_0 = arith.constant 0 : index
    %0 = vector.load %arg2[%c0, %c0_0] : memref<8x128xf32, #tpu.memory_space<vmem>>, vector<8x128xf32>
    %c0_1 = arith.constant 0 : index
    %c0_2 = arith.constant 0 : index
    %1 = vector.load %arg1[%c0_1, %c0_2] : memref<8x128xf32, #tpu.memory_space<vmem>>, vector<8x128xf32>
    %c0_3 = arith.constant 0 : index
    %c0_4 = arith.constant 0 : index
    %2 = vector.load %arg2[%c0_3, %c0_4] : memref<8x128xf32, #tpu.memory_space<vmem>>, vector<8x128xf32>
    %c0_5 = arith.constant 0 : index
    %c0_6 = arith.constant 0 : index
    %3 = vector.load %arg3[%c0_5, %c0_6] : memref<128x384xf32, #tpu.memory_space<vmem>>, vector<128x384xf32>
    %c0_7 = arith.constant 0 : index
    %c0_8 = arith.constant 0 : index
    %4 = vector.load %arg4[%c0_7, %c0_8] : memref<128x384xf32, #tpu.memory_space<vmem>>, vector<128x384xf32>
    %c0_9 = arith.constant 0 : index
    %c0_10 = arith.constant 0 : index
    %5 = vector.load %arg5[%c0_9, %c0_10] : memref<1x384xf32, #tpu.memory_space<vmem>>, vector<1x384xf32>
    %c0_11 = arith.constant 0 : index
    %c0_12 = arith.constant 0 : index
    %6 = vector.load %arg6[%c0_11, %c0_12] : memref<1x128xf32, #tpu.memory_space<vmem>>, vector<1x128xf32>
    %cst = arith.constant dense<0.000000e+00> : vector<8x384xf32>
    %7 = tpu.matmul %1, %3, %cst {dimension_numbers = #tpu.dot_dimension_numbers<[1], [0], [0], [1], [0, 0, 1, 1], [], []>} : vector<8x128xf32>, vector<128x384xf32>, vector<8x384xf32> -> vector<8x384xf32>
    %8 = vector.broadcast %5 : vector<1x384xf32> to vector<8x384xf32>
    %9 = arith.addf %7, %8 : vector<8x384xf32>
    %cst_13 = arith.constant dense<0.000000e+00> : vector<8x384xf32>
    %10 = tpu.matmul %2, %4, %cst_13 {dimension_numbers = #tpu.dot_dimension_numbers<[1], [0], [0], [1], [0, 0, 1, 1], [], []>} : vector<8x128xf32>, vector<128x384xf32>, vector<8x384xf32> -> vector<8x384xf32>
    %11 = vector.extract_strided_slice %9 {offsets = [0, 0], sizes = [8, 256], strides = [1, 1]} : vector<8x384xf32> to vector<8x256xf32>
    %12 = vector.extract_strided_slice %10 {offsets = [0, 0], sizes = [8, 256], strides = [1, 1]} : vector<8x384xf32> to vector<8x256xf32>
    %13 = arith.addf %11, %12 : vector<8x256xf32>
    %14 = arith.negf %13 : vector<8x256xf32>
    %15 = math.exp %14 : vector<8x256xf32>
    %cst_14 = arith.constant 1.000000e+00 : f32
    %16 = vector.broadcast %cst_14 : f32 to vector<8x256xf32>
    %17 = arith.addf %16, %15 : vector<8x256xf32>
    %18 = arith.divf %16, %17 : vector<8x256xf32>
    %19 = vector.extract_strided_slice %18 {offsets = [0, 0], sizes = [8, 128], strides = [1, 1]} : vector<8x256xf32> to vector<8x128xf32>
    %20 = vector.extract_strided_slice %18 {offsets = [0, 128], sizes = [8, 128], strides = [1, 1]} : vector<8x256xf32> to vector<8x128xf32>
    %21 = vector.extract_strided_slice %9 {offsets = [0, 256], sizes = [8, 128], strides = [1, 1]} : vector<8x384xf32> to vector<8x128xf32>
    %22 = arith.addf %21, %19 : vector<8x128xf32>
    %23 = vector.extract_strided_slice %10 {offsets = [0, 256], sizes = [8, 128], strides = [1, 1]} : vector<8x384xf32> to vector<8x128xf32>
    %24 = vector.broadcast %6 : vector<1x128xf32> to vector<8x128xf32>
    %25 = arith.addf %23, %24 : vector<8x128xf32>
    %26 = arith.mulf %22, %25 : vector<8x128xf32>
    %27 = math.tanh %26 : vector<8x128xf32>
    %28 = arith.subf %0, %27 : vector<8x128xf32>
    %29 = arith.mulf %20, %28 : vector<8x128xf32>
    %30 = arith.addf %27, %29 : vector<8x128xf32>
    %c0_15 = arith.constant 0 : index
    %c0_16 = arith.constant 0 : index
    %31 = vector.load %arg7[%c0_15, %c0_16] : memref<8x128xf32, #tpu.memory_space<vmem>>, vector<8x128xf32>
    tpu.vector_store %arg7[%c0_15, %c0_16], %30 {strides = array<i32>} : memref<8x128xf32, #tpu.memory_space<vmem>>, vector<8x128xf32>,
    return
  }
  func.func @transform_0(%arg0: i32) -> (i32, i32) {
    %c0_i32 = arith.constant 0 : i32
    %c0_i32_0 = arith.constant 0 : i32
    return %arg0, %c0_i32 : i32, i32
  }
  func.func @transform_1(%arg0: i32) -> (i32, i32) {
    %c0_i32 = arith.constant 0 : i32
    %c0_i32_0 = arith.constant 0 : i32
    return %arg0, %c0_i32 : i32, i32
  }
  func.func @transform_2(%arg0: i32) -> (i32, i32) {
    %c0_i32 = arith.constant 0 : i32
    %c0_i32_0 = arith.constant 0 : i32
    %c0_i32_1 = arith.constant 0 : i32
    return %c0_i32, %c0_i32_0 : i32, i32
  }
  func.func @transform_3(%arg0: i32) -> (i32, i32) {
    %c0_i32 = arith.constant 0 : i32
    %c0_i32_0 = arith.constant 0 : i32
    %c0_i32_1 = arith.constant 0 : i32
    return %c0_i32, %c0_i32_0 : i32, i32
  }
  func.func @transform_4(%arg0: i32) -> (i32, i32) {
    %c0_i32 = arith.constant 0 : i32
    %c0_i32_0 = arith.constant 0 : i32
    %c0_i32_1 = arith.constant 0 : i32
    return %c0_i32, %c0_i32_0 : i32, i32
  }
  func.func @transform_5(%arg0: i32) -> (i32, i32) {
    %c0_i32 = arith.constant 0 : i32
    %c0_i32_0 = arith.constant 0 : i32
    %c0_i32_1 = arith.constant 0 : i32
    return %c0_i32, %c0_i32_0 : i32, i32
  }
  func.func @transform_6(%arg0: i32) -> (i32, i32) {
    %c0_i32 = arith.constant 0 : i32
    %c0_i32_0 = arith.constant 0 : i32
    return %arg0, %c0_i32 : i32, i32
  }
}

module attributes {stable_mosaic.version = 11 : i64} {
  func.func @gru_step_kernel(%arg0: i32, %arg1: memref<8x128xf32, #tpu.memory_space<vmem>>, %arg2: memref<8x128xf32, #tpu.memory_space<vmem>>, %arg3: memref<128x384xf32, #tpu.memory_space<vmem>>, %arg4: memref<128x384xf32, #tpu.memory_space<vmem>>, %arg5: memref<1x384xf32, #tpu.memory_space<vmem>>, %arg6: memref<1x128xf32, #tpu.memory_space<vmem>>, %arg7: memref<8x128xf32, #tpu.memory_space<vmem>>) attributes {dimension_semantics = [#tpu.dimension_semantics<parallel>], iteration_bounds = array<i64: 1>, scalar_prefetch = 0 : i64, scratch_operands = 0 : i64, tpu.core_type = #tpu.core_type<tc>, window_params = [{transform_indices = @transform_0, window_bounds = array<i64: 8, 128>}, {transform_indices = @transform_1, window_bounds = array<i64: 8, 128>}, {pipeline_mode = #tpu.pipeline_mode<synchronous>, transform_indices = @transform_2, window_bounds = array<i64: 128, 384>}, {pipeline_mode = #tpu.pipeline_mode<synchronous>, transform_indices = @transform_3, window_bounds = array<i64: 128, 384>}, {pipeline_mode = #tpu.pipeline_mode<synchronous>, transform_indices = @transform_4, window_bounds = array<i64: 1, 384>}, {pipeline_mode = #tpu.pipeline_mode<synchronous>, transform_indices = @transform_5, window_bounds = array<i64: 1, 128>}, {transform_indices = @transform_6, window_bounds = array<i64: 8, 128>}]} {
    %c0 = arith.constant 0 : index
    %c0_0 = arith.constant 0 : index
    %0 = vector.load %arg2[%c0, %c0_0] : memref<8x128xf32, #tpu.memory_space<vmem>>, vector<8x128xf32>
    %c0_1 = arith.constant 0 : index
    %c0_2 = arith.constant 0 : index
    %1 = vector.load %arg1[%c0_1, %c0_2] : memref<8x128xf32, #tpu.memory_space<vmem>>, vector<8x128xf32>
    %c0_3 = arith.constant 0 : index
    %c0_4 = arith.constant 0 : index
    %2 = vector.load %arg2[%c0_3, %c0_4] : memref<8x128xf32, #tpu.memory_space<vmem>>, vector<8x128xf32>
    %c0_5 = arith.constant 0 : index
    %c0_6 = arith.constant 0 : index
    %3 = vector.load %arg3[%c0_5, %c0_6] : memref<128x384xf32, #tpu.memory_space<vmem>>, vector<128x384xf32>
    %c0_7 = arith.constant 0 : index
    %c0_8 = arith.constant 0 : index
    %4 = vector.load %arg4[%c0_7, %c0_8] : memref<128x384xf32, #tpu.memory_space<vmem>>, vector<128x384xf32>
    %c0_9 = arith.constant 0 : index
    %c0_10 = arith.constant 0 : index
    %5 = vector.load %arg5[%c0_9, %c0_10] : memref<1x384xf32, #tpu.memory_space<vmem>>, vector<1x384xf32>
    %c0_11 = arith.constant 0 : index
    %c0_12 = arith.constant 0 : index
    %6 = vector.load %arg6[%c0_11, %c0_12] : memref<1x128xf32, #tpu.memory_space<vmem>>, vector<1x128xf32>
    %cst = arith.constant dense<0.000000e+00> : vector<8x384xf32>
    %7 = tpu.matmul %1, %3, %cst {dimension_numbers = #tpu.dot_dimension_numbers<[1], [0], [0], [1], [0, 0, 1, 1], [], []>} : vector<8x128xf32>, vector<128x384xf32>, vector<8x384xf32> -> vector<8x384xf32>
    %8 = vector.broadcast %5 : vector<1x384xf32> to vector<8x384xf32>
    %9 = arith.addf %7, %8 : vector<8x384xf32>
    %cst_13 = arith.constant dense<0.000000e+00> : vector<8x384xf32>
    %10 = tpu.matmul %2, %4, %cst_13 {dimension_numbers = #tpu.dot_dimension_numbers<[1], [0], [0], [1], [0, 0, 1, 1], [], []>} : vector<8x128xf32>, vector<128x384xf32>, vector<8x384xf32> -> vector<8x384xf32>
    %11 = vector.extract_strided_slice %9 {offsets = [0, 0], sizes = [8, 256], strides = [1, 1]} : vector<8x384xf32> to vector<8x256xf32>
    %12 = vector.extract_strided_slice %10 {offsets = [0, 0], sizes = [8, 256], strides = [1, 1]} : vector<8x384xf32> to vector<8x256xf32>
    %13 = arith.addf %11, %12 : vector<8x256xf32>
    %14 = arith.negf %13 : vector<8x256xf32>
    %15 = math.exp %14 : vector<8x256xf32>
    %cst_14 = arith.constant 1.000000e+00 : f32
    %16 = vector.broadcast %cst_14 : f32 to vector<8x256xf32>
    %17 = arith.addf %16, %15 : vector<8x256xf32>
    %18 = arith.divf %16, %17 : vector<8x256xf32>
    %19 = vector.extract_strided_slice %18 {offsets = [0, 0], sizes = [8, 128], strides = [1, 1]} : vector<8x256xf32> to vector<8x128xf32>
    %20 = vector.extract_strided_slice %18 {offsets = [0, 128], sizes = [8, 128], strides = [1, 1]} : vector<8x256xf32> to vector<8x128xf32>
    %21 = vector.extract_strided_slice %9 {offsets = [0, 256], sizes = [8, 128], strides = [1, 1]} : vector<8x384xf32> to vector<8x128xf32>
    %22 = arith.addf %21, %19 : vector<8x128xf32>
    %23 = vector.extract_strided_slice %10 {offsets = [0, 256], sizes = [8, 128], strides = [1, 1]} : vector<8x384xf32> to vector<8x128xf32>
    %24 = vector.broadcast %6 : vector<1x128xf32> to vector<8x128xf32>
    %25 = arith.addf %23, %24 : vector<8x128xf32>
    %26 = arith.mulf %22, %25 : vector<8x128xf32>
    %27 = math.tanh %26 : vector<8x128xf32>
    %28 = arith.subf %0, %27 : vector<8x128xf32>
    %29 = arith.mulf %20, %28 : vector<8x128xf32>
    %30 = arith.addf %27, %29 : vector<8x128xf32>
    %c0_15 = arith.constant 0 : index
    %c0_16 = arith.constant 0 : index
    %31 = vector.load %arg7[%c0_15, %c0_16] : memref<8x128xf32, #tpu.memory_space<vmem>>, vector<8x128xf32>
    tpu.vector_store %arg7[%c0_15, %c0_16], %30 {strides = array<i32>} : memref<8x128xf32, #tpu.memory_space<vmem>>, vector<8x128xf32>,
    return
  }
  func.func @transform_0(%arg0: i32) -> (i32, i32) {
    %c0_i32 = arith.constant 0 : i32
    %c0_i32_0 = arith.constant 0 : i32
    return %arg0, %c0_i32 : i32, i32
  }
  func.func @transform_1(%arg0: i32) -> (i32, i32) {
    %c0_i32 = arith.constant 0 : i32
    %c0_i32_0 = arith.constant 0 : i32
    return %arg0, %c0_i32 : i32, i32
  }
  func.func @transform_2(%arg0: i32) -> (i32, i32) {
    %c0_i32 = arith.constant 0 : i32
    %c0_i32_0 = arith.constant 0 : i32
    %c0_i32_1 = arith.constant 0 : i32
    return %c0_i32, %c0_i32_0 : i32, i32
  }
  func.func @transform_3(%arg0: i32) -> (i32, i32) {
    %c0_i32 = arith.constant 0 : i32
    %c0_i32_0 = arith.constant 0 : i32
    %c0_i32_1 = arith.constant 0 : i32
    return %c0_i32, %c0_i32_0 : i32, i32
  }
  func.func @transform_4(%arg0: i32) -> (i32, i32) {
    %c0_i32 = arith.constant 0 : i32
    %c0_i32_0 = arith.constant 0 : i32
    %c0_i32_1 = arith.constant 0 : i32
    return %c0_i32, %c0_i32_0 : i32, i32
  }
  func.func @transform_5(%arg0: i32) -> (i32, i32) {
    %c0_i32 = arith.constant 0 : i32
    %c0_i32_0 = arith.constant 0 : i32
    %c0_i32_1 = arith.constant 0 : i32
    return %c0_i32, %c0_i32_0 : i32, i32
  }
  func.func @transform_6(%arg0: i32) -> (i32, i32) {
    %c0_i32 = arith.constant 0 : i32
    %c0_i32_0 = arith.constant 0 : i32
    return %arg0, %c0_i32 : i32, i32
  }
}

</mosaic_0001>

<llo_original>
// kernel: tpu_custom_call.1
$region0: #{tpu_custom_call.1}
  #allocation0 [shape = 'u32[]', space=smem, size = 0x4, offset = 0x4, fixed_abs, tag = 'smem constant byte address 0x4 - core index']
  #allocation1 [shape = 'u32[144,128]{1,0:T(1,128)}', space=vmem, size = 0x12000, scoped, tag = 'internal scratch']
  %s0 = inlined_call_operand.hbm [shape: f32[8,128], index: 0, kind: input, shape index: {}]
  %s1 = inlined_call_operand.hbm [shape: f32[8,128], index: 1, kind: input, shape index: {}]
  %s2 = inlined_call_operand.hbm [shape: f32[128,384], index: 2, kind: input, shape index: {}]
  %s3 = inlined_call_operand.hbm [shape: f32[128,384], index: 3, kind: input, shape index: {}]
  %s4 = inlined_call_operand.vmem [shape: f32[1,384], index: 4, kind: input, shape index: {}]
  %s5 = inlined_call_operand.vmem [shape: f32[1,128], index: 5, kind: input, shape index: {}]
  %s6 = inlined_call_operand.hbm [shape: f32[8,128], index: 6, kind: output, shape index: {}]
  %s7 = sld [smem:[#allocation0]]
  $region50: #{tpu_custom_call.1} parent=0
    _
  %s9 = ssub.s32 1, %s7
  %s10 = scalar_select 0, %s9, %s7
  $region1: #{tpu_custom_call.1} parent=0
    #allocation2 [shape = 'u8[4096]{0}', space=vmem, size = 0x1000, scoped, tag = 'input window, operand 0, single buffered']
    #allocation3 [shape = 's32[1]{0}', space=sflag, size = 0x4, scoped, tag = 'scoped memory for tpu_custom_call.1']
    #allocation4 [shape = 's32[1]{0}', space=sflag, size = 0x4, scoped, tag = 'scoped memory for tpu_custom_call.1']
    #allocation5 [shape = 'u8[4096]{0}', space=vmem, size = 0x1000, scoped, tag = 'input window, operand 1, single buffered']
    #allocation6 [shape = 's32[1]{0}', space=sflag, size = 0x4, scoped, tag = 'scoped memory for tpu_custom_call.1']
    #allocation7 [shape = 'u8[196608]{0}', space=vmem, size = 0x30000, scoped, tag = 'input window, operand 2, single buffered']
    #allocation8 [shape = 'u8[196608]{0}', space=vmem, size = 0x30000, scoped, tag = 'input window, operand 3, single buffered']
    #allocation9 [shape = 's32[1]{0}', space=sflag, size = 0x4, scoped, tag = 'scoped memory for tpu_custom_call.1']
    #allocation10 [shape = 'u8[4096]{0}', space=vmem, size = 0x1000, scoped, tag = 'output window, operand 0, single buffered']
    %11 = vsyncpa [#allocation3], 0
    %12 = vsyncpa [#allocation6], 0
    %13 = vsyncpa [#allocation9], 0
    %14 = vsyncpa [#allocation4], 0
    // Predicated region
    $region2: #{tpu_custom_call.1} parent=1 // pred_check
      _
    $region3: #{tpu_custom_call.1} parent=1 // pred_check_branch
      %16 = sbr.rel (0) target = $region5
    $region4: #{tpu_custom_call.1} parent=1 // pred_region
      %s18 = ssub.s32 128, 128
      %19 = vsyncadd [#allocation3], %s18
      %s21 = sshll.u32 [#allocation2], 4
      %s22 = int_to_ptr.vmem [resolvable:$true] %s21
      %24 = dma.hbm_to_vmem [thread:$0]  %s0, 128, %s22, [#allocation3]
    $region5: #{tpu_custom_call.1} parent=1 // pred_fallthru
      _
    // Predicated region
    $region6: #{tpu_custom_call.1} parent=1 // pred_check
      _
    $region7: #{tpu_custom_call.1} parent=1 // pred_check_branch
      %26 = sbr.rel (0) target = $region9
    $region8: #{tpu_custom_call.1} parent=1 // pred_region
      %s28 = ssub.s32 128, 128
      %29 = vsyncadd [#allocation6], %s28
      %s31 = sshll.u32 [#allocation5], 4
      %s32 = int_to_ptr.vmem [resolvable:$true] %s31
      %34 = dma.hbm_to_vmem [thread:$0]  %s1, 128, %s32, [#allocation6]
    $region9: #{tpu_custom_call.1} parent=1 // pred_fallthru
      _
    // Predicated region
    $region10: #{tpu_custom_call.1} parent=1 // pred_check
      _
    $region11: #{tpu_custom_call.1} parent=1 // pred_check_branch
      %36 = sbr.rel (0) target = $region13
    $region12: #{tpu_custom_call.1} parent=1 // pred_region
      %s38 = ssub.s32 6144, 6144
      %39 = vsyncadd [#allocation6], %s38
      %s40 = sshll.u32 [#allocation7], 4
      %s41 = int_to_ptr.vmem [resolvable:$true] %s40
      %46 = dma.hbm_to_vmem [thread:$0]  %s2, 6144, %s41, [#allocation6], 384, 384, 24
    $region13: #{tpu_custom_call.1} parent=1 // pred_fallthru
      _
    // Predicated region
    $region14: #{tpu_custom_call.1} parent=1 // pred_check
      _
    $region15: #{tpu_custom_call.1} parent=1 // pred_check_branch
      %48 = sbr.rel (0) target = $region17
    $region16: #{tpu_custom_call.1} parent=1 // pred_region
      %s50 = ssub.s32 6144, 6144
      %51 = vsyncadd [#allocation9], %s50
      %s52 = sshll.u32 [#allocation8], 4
      %s53 = int_to_ptr.vmem [resolvable:$true] %s52
      %58 = dma.hbm_to_vmem [thread:$0]  %s3, 6144, %s53, [#allocation9], 384, 384, 24
    $region17: #{tpu_custom_call.1} parent=1 // pred_fallthru
      _
    // Predicated region
    $region18: #{tpu_custom_call.1} parent=1 // pred_check
      _
    $region19: #{tpu_custom_call.1} parent=1 // pred_check_branch
      %60 = sbr.rel (0) target = $region21
    $region20: #{tpu_custom_call.1} parent=1 // pred_region
      _
    $region21: #{tpu_custom_call.1} parent=1 // pred_fallthru
      _
    // Predicated region
    $region22: #{tpu_custom_call.1} parent=1 // pred_check
      _
    $region23: #{tpu_custom_call.1} parent=1 // pred_check_branch
      %62 = sbr.rel (0) target = $region25
    $region24: #{tpu_custom_call.1} parent=1 // pred_region
      _
    $region25: #{tpu_custom_call.1} parent=1 // pred_fallthru
      _
    // Predicated region
    $region26: #{tpu_custom_call.1} parent=1 // pred_check
      _
    $region27: #{tpu_custom_call.1} parent=1 // pred_check_branch
      %64 = sbr.rel (0) target = $region29
    $region28: #{tpu_custom_call.1} parent=1 // pred_region
      %65 = dma.done [#allocation3], 128
    $region29: #{tpu_custom_call.1} parent=1 // pred_fallthru
      _
    // Predicated region
    $region30: #{tpu_custom_call.1} parent=1 // pred_check
      _
    $region31: #{tpu_custom_call.1} parent=1 // pred_check_branch
      %67 = sbr.rel (0) target = $region33
    $region32: #{tpu_custom_call.1} parent=1 // pred_region
      %68 = dma.done [#allocation6], 128
    $region33: #{tpu_custom_call.1} parent=1 // pred_fallthru
      _
    // Predicated region
    $region34: #{tpu_custom_call.1} parent=1 // pred_check
      _
    $region35: #{tpu_custom_call.1} parent=1 // pred_check_branch
      %70 = sbr.rel (0) target = $region37
    $region36: #{tpu_custom_call.1} parent=1 // pred_region
      %71 = dma.done [#allocation6], 6144
    $region37: #{tpu_custom_call.1} parent=1 // pred_fallthru
      _
    // Predicated region
    $region38: #{tpu_custom_call.1} parent=1 // pred_check
      _
    $region39: #{tpu_custom_call.1} parent=1 // pred_check_branch
      %73 = sbr.rel (0) target = $region41
    $region40: #{tpu_custom_call.1} parent=1 // pred_region
      %74 = dma.done [#allocation9], 6144
    $region41: #{tpu_custom_call.1} parent=1 // pred_fallthru
      _
    %v75 = vld [vmem:[#allocation5] sm:$0xff]
    %v76 = vld [vmem:[#allocation2] sm:$0xff]
    %v77 = vld [vmem:[#allocation7] sm:$0xff]
    %v78 = vld [vmem:[#allocation7 + $0x8] sm:$0xff]
    %v79 = vld [vmem:[#allocation7 + $0x10] sm:$0xff]
    %v80 = vld [vmem:[#allocation7 + $0x18] sm:$0xff]
    %v81 = vld [vmem:[#allocation7 + $0x20] sm:$0xff]
    %v82 = vld [vmem:[#allocation7 + $0x28] sm:$0xff]
    %v83 = vld [vmem:[#allocation7 + $0x30] sm:$0xff]
    %v84 = vld [vmem:[#allocation7 + $0x38] sm:$0xff]
    %v85 = vld [vmem:[#allocation7 + $0x40] sm:$0xff]
    %v86 = vld [vmem:[#allocation7 + $0x48] sm:$0xff]
    %v87 = vld [vmem:[#allocation7 + $0x50] sm:$0xff]
    %v88 = vld [vmem:[#allocation7 + $0x58] sm:$0xff]
    %v89 = vld [vmem:[#allocation7 + $0x60] sm:$0xff]
    %v90 = vld [vmem:[#allocation7 + $0x68] sm:$0xff]
    %v91 = vld [vmem:[#allocation7 + $0x70] sm:$0xff]
    %v92 = vld [vmem:[#allocation7 + $0x78] sm:$0xff]
    %v93 = vld [vmem:[#allocation7 + $0x80] sm:$0xff]
    %v94 = vld [vmem:[#allocation7 + $0x88] sm:$0xff]
    %v95 = vld [vmem:[#allocation7 + $0x90] sm:$0xff]
    %v96 = vld [vmem:[#allocation7 + $0x98] sm:$0xff]
    %v97 = vld [vmem:[#allocation7 + $0xa0] sm:$0xff]
    %v98 = vld [vmem:[#allocation7 + $0xa8] sm:$0xff]
    %v99 = vld [vmem:[#allocation7 + $0xb0] sm:$0xff]
    %v100 = vld [vmem:[#allocation7 + $0xb8] sm:$0xff]
    %v101 = vld [vmem:[#allocation7 + $0xc0] sm:$0xff]
    %v102 = vld [vmem:[#allocation7 + $0xc8] sm:$0xff]
    %v103 = vld [vmem:[#allocation7 + $0xd0] sm:$0xff]
    %v104 = vld [vmem:[#allocation7 + $0xd8] sm:$0xff]
    %v105 = vld [vmem:[#allocation7 + $0xe0] sm:$0xff]
    %v106 = vld [vmem:[#allocation7 + $0xe8] sm:$0xff]
    %v107 = vld [vmem:[#allocation7 + $0xf0] sm:$0xff]
    %v108 = vld [vmem:[#allocation7 + $0xf8] sm:$0xff]
    %v109 = vld [vmem:[#allocation7 + $0x100] sm:$0xff]
    %v110 = vld [vmem:[#allocation7 + $0x108] sm:$0xff]
    %v111 = vld [vmem:[#allocation7 + $0x110] sm:$0xff]
    %v112 = vld [vmem:[#allocation7 + $0x118] sm:$0xff]
    %v113 = vld [vmem:[#allocation7 + $0x120] sm:$0xff]
    %v114 = vld [vmem:[#allocation7 + $0x128] sm:$0xff]
    %v115 = vld [vmem:[#allocation7 + $0x130] sm:$0xff]
    %v116 = vld [vmem:[#allocation7 + $0x138] sm:$0xff]
    %v117 = vld [vmem:[#allocation7 + $0x140] sm:$0xff]
    %v118 = vld [vmem:[#allocation7 + $0x148] sm:$0xff]
    %v119 = vld [vmem:[#allocation7 + $0x150] sm:$0xff]
    %v120 = vld [vmem:[#allocation7 + $0x158] sm:$0xff]
    %v121 = vld [vmem:[#allocation7 + $0x160] sm:$0xff]
    %v122 = vld [vmem:[#allocation7 + $0x168] sm:$0xff]
    %v123 = vld [vmem:[#allocation7 + $0x170] sm:$0xff]
    %v124 = vld [vmem:[#allocation7 + $0x178] sm:$0xff]
    %v125 = vld [vmem:[#allocation8] sm:$0xff]
    %v126 = vld [vmem:[#allocation8 + $0x8] sm:$0xff]
    %v127 = vld [vmem:[#allocation8 + $0x10] sm:$0xff]
    %v128 = vld [vmem:[#allocation8 + $0x18] sm:$0xff]
    %v129 = vld [vmem:[#allocation8 + $0x20] sm:$0xff]
    %v130 = vld [vmem:[#allocation8 + $0x28] sm:$0xff]
    %v131 = vld [vmem:[#allocation8 + $0x30] sm:$0xff]
    %v132 = vld [vmem:[#allocation8 + $0x38] sm:$0xff]
    %v133 = vld [vmem:[#allocation8 + $0x40] sm:$0xff]
    %v134 = vld [vmem:[#allocation8 + $0x48] sm:$0xff]
    %v135 = vld [vmem:[#allocation8 + $0x50] sm:$0xff]
    %v136 = vld [vmem:[#allocation8 + $0x58] sm:$0xff]
    %v137 = vld [vmem:[#allocation8 + $0x60] sm:$0xff]
    %v138 = vld [vmem:[#allocation8 + $0x68] sm:$0xff]
    %v139 = vld [vmem:[#allocation8 + $0x70] sm:$0xff]
    %v140 = vld [vmem:[#allocation8 + $0x78] sm:$0xff]
    %v141 = vld [vmem:[#allocation8 + $0x80] sm:$0xff]
    %v142 = vld [vmem:[#allocation8 + $0x88] sm:$0xff]
    %v143 = vld [vmem:[#allocation8 + $0x90] sm:$0xff]
    %v144 = vld [vmem:[#allocation8 + $0x98] sm:$0xff]
    %v145 = vld [vmem:[#allocation8 + $0xa0] sm:$0xff]
    %v146 = vld [vmem:[#allocation8 + $0xa8] sm:$0xff]
    %v147 = vld [vmem:[#allocation8 + $0xb0] sm:$0xff]
    %v148 = vld [vmem:[#allocation8 + $0xb8] sm:$0xff]
    %v149 = vld [vmem:[#allocation8 + $0xc0] sm:$0xff]
    %v150 = vld [vmem:[#allocation8 + $0xc8] sm:$0xff]
    %v151 = vld [vmem:[#allocation8 + $0xd0] sm:$0xff]
    %v152 = vld [vmem:[#allocation8 + $0xd8] sm:$0xff]
    %v153 = vld [vmem:[#allocation8 + $0xe0] sm:$0xff]
    %v154 = vld [vmem:[#allocation8 + $0xe8] sm:$0xff]
    %v155 = vld [vmem:[#allocation8 + $0xf0] sm:$0xff]
    %v156 = vld [vmem:[#allocation8 + $0xf8] sm:$0xff]
    %v157 = vld [vmem:[#allocation8 + $0x100] sm:$0xff]
    %v158 = vld [vmem:[#allocation8 + $0x108] sm:$0xff]
    %v159 = vld [vmem:[#allocation8 + $0x110] sm:$0xff]
    %v160 = vld [vmem:[#allocation8 + $0x118] sm:$0xff]
    %v161 = vld [vmem:[#allocation8 + $0x120] sm:$0xff]
    %v162 = vld [vmem:[#allocation8 + $0x128] sm:$0xff]
    %v163 = vld [vmem:[#allocation8 + $0x130] sm:$0xff]
    %v164 = vld [vmem:[#allocation8 + $0x138] sm:$0xff]
    %v165 = vld [vmem:[#allocation8 + $0x140] sm:$0xff]
    %v166 = vld [vmem:[#allocation8 + $0x148] sm:$0xff]
    %v167 = vld [vmem:[#allocation8 + $0x150] sm:$0xff]
    %v168 = vld [vmem:[#allocation8 + $0x158] sm:$0xff]
    %v169 = vld [vmem:[#allocation8 + $0x160] sm:$0xff]
    %v170 = vld [vmem:[#allocation8 + $0x168] sm:$0xff]
    %v171 = vld [vmem:[#allocation8 + $0x170] sm:$0xff]
    %v172 = vld [vmem:[#allocation8 + $0x178] sm:$0xff]
    %v173 = vld [vmem:[%s4] sm:$0x7]
    %v174 = vld [vmem:[%s5] sm:$0x1]
    %v176 = vlaneseq
    %v177 = vshrl.u32 %v176, 7
    %v178 = vsub.s32 0, %v177
    %v179 = vrot.slane %v173, %v178
    %v180 = vlaneseq
    %v181 = vshrl.u32 %v180, 7
    %v182 = vsub.s32 1, %v181
    %v183 = vrot.slane %v173, %v182
    %v184 = vlaneseq
    %v185 = vshrl.u32 %v184, 7
    %v186 = vsub.s32 2, %v185
    %v187 = vrot.slane %v173, %v186
    %191 = vmatprep.subr.mxu0 %v123
    %192 = vmatpush1.msra.mxu0 %v122
    %193 = vmatprep.subr.mxu0 %v120
    %194 = vmatpush1.msra.mxu0 %v119
    %195 = vmatprep.subr.mxu0 %v117
    %196 = vmatpush1.msra.mxu0 %v116
    %197 = vmatprep.subr.mxu0 %v114
    %198 = vmatpush1.msra.mxu0 %v113
    %199 = vmatprep.subr.mxu0 %v111
    %200 = vmatpush1.msra.mxu0 %v110
    %201 = vmatprep.subr.mxu0 %v108
    %202 = vmatpush1.msra.mxu0 %v107
    %203 = vmatprep.subr.mxu0 %v105
    %204 = vmatpush1.msra.mxu0 %v104
    %205 = vmatprep.subr.mxu0 %v102
    %206 = vmatpush1.msra.mxu0 %v101
    %207 = vmatprep.subr.mxu0 %v99
    %208 = vmatpush1.msra.mxu0 %v98
    %209 = vmatprep.subr.mxu0 %v96
    %210 = vmatpush1.msra.mxu0 %v95
    %211 = vmatprep.subr.mxu0 %v93
    %212 = vmatpush1.msra.mxu0 %v92
    %213 = vmatprep.subr.mxu0 %v90
    %214 = vmatpush1.msra.mxu0 %v89
    %215 = vmatprep.subr.mxu0 %v87
    %216 = vmatpush1.msra.mxu0 %v86
    %217 = vmatprep.subr.mxu0 %v84
    %218 = vmatpush1.msra.mxu0 %v83
    %219 = vmatprep.subr.mxu0 %v81
    %220 = vmatpush1.msra.mxu0 %v80
    %221 = vmatprep.subr.mxu0 %v78
    %222 = vmatpush1.msra.mxu0 %v77
    %223 = vmatprep.subr.mxu0 0.0
    %224 = vmatpush2.msra.mxu0 0.0
    %225 = vmatprep.subr.mxu0 0.0
    %226 = vmatpush2.msra.mxu0 0.0
    %227 = vmatprep.subr.mxu0 0.0
    %228 = vmatpush2.msra.mxu0 0.0
    %229 = vmatprep.subr.mxu0 0.0
    %230 = vmatpush2.msra.mxu0 0.0
    %231 = vmatprep.subr.mxu0 0.0
    %232 = vmatpush2.msra.mxu0 0.0
    %233 = vmatprep.subr.mxu0 0.0
    %234 = vmatpush2.msra.mxu0 0.0
    %235 = vmatprep.subr.mxu0 0.0
    %236 = vmatpush2.msra.mxu0 0.0
    %237 = vmatprep.subr.mxu0 0.0
    %238 = vmatpush2.msra.mxu0 0.0
    %239 = vmatprep.subr.mxu0 0.0
    %240 = vmatpush2.msra.mxu0 0.0
    %241 = vmatprep.subr.mxu0 0.0
    %242 = vmatpush2.msra.mxu0 0.0
    %243 = vmatprep.subr.mxu0 0.0
    %244 = vmatpush2.msra.mxu0 0.0
    %245 = vmatprep.subr.mxu0 0.0
    %246 = vmatpush2.msra.mxu0 0.0
    %247 = vmatprep.subr.mxu0 0.0
    %248 = vmatpush2.msra.mxu0 0.0
    %249 = vmatprep.subr.mxu0 0.0
    %250 = vmatpush2.msra.mxu0 0.0
    %251 = vmatprep.subr.mxu0 0.0
    %252 = vmatpush2.msra.mxu0 0.0
    %253 = vmatprep.subr.mxu0 0.0
    %254 = vmatpush2.msra.mxu0 0.0
    %255 = vmatprep.mubr.f32.mxu0 0.0
    %256 = vmatmul.mubr.f32.gmra.mxu0 %v76
    %v257 = vpop.f32.mrf.mxu0
    %v258 = vadd.f32 %v179, %v257
    %v259 = vpop.f32.mrf.mxu0
    %v260 = vadd.f32 %v183, %v259
    %261 = vdwg.mxu0
    %262 = vmatprep.subr.mxu0 0.0
    %263 = vmatpush1.msra.mxu0 %v124
    %264 = vmatprep.subr.mxu0 0.0
    %265 = vmatpush1.msra.mxu0 %v121
    %266 = vmatprep.subr.mxu0 0.0
    %267 = vmatpush1.msra.mxu0 %v118
    %268 = vmatprep.subr.mxu0 0.0
    %269 = vmatpush1.msra.mxu0 %v115
    %270 = vmatprep.subr.mxu0 0.0
    %271 = vmatpush1.msra.mxu0 %v112
    %272 = vmatprep.subr.mxu0 0.0
    %273 = vmatpush1.msra.mxu0 %v109
    %274 = vmatprep.subr.mxu0 0.0
    %275 = vmatpush1.msra.mxu0 %v106
    %276 = vmatprep.subr.mxu0 0.0
    %277 = vmatpush1.msra.mxu0 %v103
    %278 = vmatprep.subr.mxu0 0.0
    %279 = vmatpush1.msra.mxu0 %v100
    %280 = vmatprep.subr.mxu0 0.0
    %281 = vmatpush1.msra.mxu0 %v97
    %282 = vmatprep.subr.mxu0 0.0
    %283 = vmatpush1.msra.mxu0 %v94
    %284 = vmatprep.subr.mxu0 0.0
    %285 = vmatpush1.msra.mxu0 %v91
    %286 = vmatprep.subr.mxu0 0.0
    %287 = vmatpush1.msra.mxu0 %v88
    %288 = vmatprep.subr.mxu0 0.0
    %289 = vmatpush1.msra.mxu0 %v85
    %290 = vmatprep.subr.mxu0 0.0
    %291 = vmatpush1.msra.mxu0 %v82
    %292 = vmatprep.subr.mxu0 0.0
    %293 = vmatpush1.msra.mxu0 %v79
    %294 = vmatprep.subr.mxu0 0.0
    %295 = vmatpush2.msra.mxu0 0.0
    %296 = vmatprep.subr.mxu0 0.0
    %297 = vmatpush2.msra.mxu0 0.0
    %298 = vmatprep.subr.mxu0 0.0
    %299 = vmatpush2.msra.mxu0 0.0
    %300 = vmatprep.subr.mxu0 0.0
    %301 = vmatpush2.msra.mxu0 0.0
    %302 = vmatprep.subr.mxu0 0.0
    %303 = vmatpush2.msra.mxu0 0.0
    %304 = vmatprep.subr.mxu0 0.0
    %305 = vmatpush2.msra.mxu0 0.0
    %306 = vmatprep.subr.mxu0 0.0
    %307 = vmatpush2.msra.mxu0 0.0
    %308 = vmatprep.subr.mxu0 0.0
    %309 = vmatpush2.msra.mxu0 0.0
    %310 = vmatprep.subr.mxu0 0.0
    %311 = vmatpush2.msra.mxu0 0.0
    %312 = vmatprep.subr.mxu0 0.0
    %313 = vmatpush2.msra.mxu0 0.0
    %314 = vmatprep.subr.mxu0 0.0
    %315 = vmatpush2.msra.mxu0 0.0
    %316 = vmatprep.subr.mxu0 0.0
    %317 = vmatpush2.msra.mxu0 0.0
    %318 = vmatprep.subr.mxu0 0.0
    %319 = vmatpush2.msra.mxu0 0.0
    %320 = vmatprep.subr.mxu0 0.0
    %321 = vmatpush2.msra.mxu0 0.0
    %322 = vmatprep.subr.mxu0 0.0
    %323 = vmatpush2.msra.mxu0 0.0
    %324 = vmatprep.subr.mxu0 0.0
    %325 = vmatpush2.msra.mxu0 0.0
    %326 = vmatprep.mubr.f32.mxu0 0.0
    %327 = vmatmul.mubr.f32.gmra.mxu0 %v76
    %v328 = vpop.f32.mrf.mxu0
    %v329 = vadd.f32 %v187, %v328
    %v330 = vpop.f32.mrf.mxu0
    %331 = vdwg.mxu0
    %332 = vmatprep.subr.mxu0 %v171
    %333 = vmatpush1.msra.mxu0 %v170
    %334 = vmatprep.subr.mxu0 %v168
    %335 = vmatpush1.msra.mxu0 %v167
    %336 = vmatprep.subr.mxu0 %v165
    %337 = vmatpush1.msra.mxu0 %v164
    %338 = vmatprep.subr.mxu0 %v162
    %339 = vmatpush1.msra.mxu0 %v161
    %340 = vmatprep.subr.mxu0 %v159
    %341 = vmatpush1.msra.mxu0 %v158
    %342 = vmatprep.subr.mxu0 %v156
    %343 = vmatpush1.msra.mxu0 %v155
    %344 = vmatprep.subr.mxu0 %v153
    %345 = vmatpush1.msra.mxu0 %v152
    %346 = vmatprep.subr.mxu0 %v150
    %347 = vmatpush1.msra.mxu0 %v149
    %348 = vmatprep.subr.mxu0 %v147
    %349 = vmatpush1.msra.mxu0 %v146
    %350 = vmatprep.subr.mxu0 %v144
    %351 = vmatpush1.msra.mxu0 %v143
    %352 = vmatprep.subr.mxu0 %v141
    %353 = vmatpush1.msra.mxu0 %v140
    %354 = vmatprep.subr.mxu0 %v138
    %355 = vmatpush1.msra.mxu0 %v137
    %356 = vmatprep.subr.mxu0 %v135
    %357 = vmatpush1.msra.mxu0 %v134
    %358 = vmatprep.subr.mxu0 %v132
    %359 = vmatpush1.msra.mxu0 %v131
    %360 = vmatprep.subr.mxu0 %v129
    %361 = vmatpush1.msra.mxu0 %v128
    %362 = vmatprep.subr.mxu0 %v126
    %363 = vmatpush1.msra.mxu0 %v125
    %364 = vmatprep.subr.mxu0 0.0
    %365 = vmatpush2.msra.mxu0 0.0
    %366 = vmatprep.subr.mxu0 0.0
    %367 = vmatpush2.msra.mxu0 0.0
    %368 = vmatprep.subr.mxu0 0.0
    %369 = vmatpush2.msra.mxu0 0.0
    %370 = vmatprep.subr.mxu0 0.0
    %371 = vmatpush2.msra.mxu0 0.0
    %372 = vmatprep.subr.mxu0 0.0
    %373 = vmatpush2.msra.mxu0 0.0
    %374 = vmatprep.subr.mxu0 0.0
    %375 = vmatpush2.msra.mxu0 0.0
    %376 = vmatprep.subr.mxu0 0.0
    %377 = vmatpush2.msra.mxu0 0.0
    %378 = vmatprep.subr.mxu0 0.0
    %379 = vmatpush2.msra.mxu0 0.0
    %380 = vmatprep.subr.mxu0 0.0
    %381 = vmatpush2.msra.mxu0 0.0
    %382 = vmatprep.subr.mxu0 0.0
    %383 = vmatpush2.msra.mxu0 0.0
    %384 = vmatprep.subr.mxu0 0.0
    %385 = vmatpush2.msra.mxu0 0.0
    %386 = vmatprep.subr.mxu0 0.0
    %387 = vmatpush2.msra.mxu0 0.0
    %388 = vmatprep.subr.mxu0 0.0
    %389 = vmatpush2.msra.mxu0 0.0
    %390 = vmatprep.subr.mxu0 0.0
    %391 = vmatpush2.msra.mxu0 0.0
    %392 = vmatprep.subr.mxu0 0.0
    %393 = vmatpush2.msra.mxu0 0.0
    %394 = vmatprep.subr.mxu0 0.0
    %395 = vmatpush2.msra.mxu0 0.0
    %396 = vmatprep.mubr.f32.mxu0 0.0
    %397 = vmatmul.mubr.f32.gmra.mxu0 %v75
    %v398 = vpop.f32.mrf.mxu0
    %v399 = vadd.f32 0.0, %v398
    %v400 = vpop.f32.mrf.mxu0
    %v401 = vadd.f32 0.0, %v400
    %402 = vdwg.mxu0
    %403 = vmatprep.subr.mxu0 0.0
    %404 = vmatpush1.msra.mxu0 %v172
    %405 = vmatprep.subr.mxu0 0.0
    %406 = vmatpush1.msra.mxu0 %v169
    %407 = vmatprep.subr.mxu0 0.0
    %408 = vmatpush1.msra.mxu0 %v166
    %409 = vmatprep.subr.mxu0 0.0
    %410 = vmatpush1.msra.mxu0 %v163
    %411 = vmatprep.subr.mxu0 0.0
    %412 = vmatpush1.msra.mxu0 %v160
    %413 = vmatprep.subr.mxu0 0.0
    %414 = vmatpush1.msra.mxu0 %v157
    %415 = vmatprep.subr.mxu0 0.0
    %416 = vmatpush1.msra.mxu0 %v154
    %417 = vmatprep.subr.mxu0 0.0
    %418 = vmatpush1.msra.mxu0 %v151
    %419 = vmatprep.subr.mxu0 0.0
    %420 = vmatpush1.msra.mxu0 %v148
    %421 = vmatprep.subr.mxu0 0.0
    %422 = vmatpush1.msra.mxu0 %v145
    %423 = vmatprep.subr.mxu0 0.0
    %424 = vmatpush1.msra.mxu0 %v142
    %425 = vmatprep.subr.mxu0 0.0
    %426 = vmatpush1.msra.mxu0 %v139
    %427 = vmatprep.subr.mxu0 0.0
    %428 = vmatpush1.msra.mxu0 %v136
    %429 = vmatprep.subr.mxu0 0.0
    %430 = vmatpush1.msra.mxu0 %v133
    %431 = vmatprep.subr.mxu0 0.0
    %432 = vmatpush1.msra.mxu0 %v130
    %433 = vmatprep.subr.mxu0 0.0
    %434 = vmatpush1.msra.mxu0 %v127
    %435 = vmatprep.subr.mxu0 0.0
    %436 = vmatpush2.msra.mxu0 0.0
    %437 = vmatprep.subr.mxu0 0.0
    %438 = vmatpush2.msra.mxu0 0.0
    %439 = vmatprep.subr.mxu0 0.0
    %440 = vmatpush2.msra.mxu0 0.0
    %441 = vmatprep.subr.mxu0 0.0
    %442 = vmatpush2.msra.mxu0 0.0
    %443 = vmatprep.subr.mxu0 0.0
    %444 = vmatpush2.msra.mxu0 0.0
    %445 = vmatprep.subr.mxu0 0.0
    %446 = vmatpush2.msra.mxu0 0.0
    %447 = vmatprep.subr.mxu0 0.0
    %448 = vmatpush2.msra.mxu0 0.0
    %449 = vmatprep.subr.mxu0 0.0
    %450 = vmatpush2.msra.mxu0 0.0
    %451 = vmatprep.subr.mxu0 0.0
    %452 = vmatpush2.msra.mxu0 0.0
    %453 = vmatprep.subr.mxu0 0.0
    %454 = vmatpush2.msra.mxu0 0.0
    %455 = vmatprep.subr.mxu0 0.0
    %456 = vmatpush2.msra.mxu0 0.0
    %457 = vmatprep.subr.mxu0 0.0
    %458 = vmatpush2.msra.mxu0 0.0
    %459 = vmatprep.subr.mxu0 0.0
    %460 = vmatpush2.msra.mxu0 0.0
    %461 = vmatprep.subr.mxu0 0.0
    %462 = vmatpush2.msra.mxu0 0.0
    %463 = vmatprep.subr.mxu0 0.0
    %464 = vmatpush2.msra.mxu0 0.0
    %465 = vmatprep.subr.mxu0 0.0
    %466 = vmatpush2.msra.mxu0 0.0
    %467 = vmatprep.mubr.f32.mxu0 0.0
    %468 = vmatmul.mubr.f32.gmra.mxu0 %v75
    %v469 = vpop.f32.mrf.mxu0
    %v470 = vadd.f32 0.0, %v469
    %v471 = vpop.f32.mrf.mxu0
    %472 = vdwg.mxu0
    %v473 = vadd.f32 %v258, %v399
    %v474 = vadd.f32 %v260, %v401
    %v475 = vxor.u32 %v473, 2147483648
    %v476 = vxor.u32 %v474, 2147483648
    %v477 = vmul.f32 %v475, 1.442695
    %v478 = vpow.pop %v477
    %v479 = vmul.f32 %v476, 1.442695
    %v480 = vpow.pop %v479
    %v481 = vadd.f32 %v478, 1.0
    %v482 = vadd.f32 %v480, 1.0
    %v483 = vrcp.pop %v481
    %v484 = vmul.f32 1.0, %v483
    %v485 = vrcp.pop %v482
    %v486 = vmul.f32 1.0, %v485
    %v487 = vadd.f32 %v329, %v484
    %v489 = vlaneseq
    %v490 = vshrl.u32 %v489, 7
    %v491 = vsub.s32 0, %v490
    %v492 = vrot.slane %v174, %v491
    %v494 = vadd.f32 %v470, %v492
    %v495 = vmul.f32 %v487, %v494
    %v496 = vtanh.pop %v495
    %v497 = vsub.f32 %v75, %v496
    %v498 = vmul.f32 %v486, %v497
    %v499 = vadd.f32 %v496, %v498
    %500 = vst [vmem:[#allocation10] sm:$0xff] %v499
    // Predicated region
    $region42: #{tpu_custom_call.1} parent=1 // pred_check
      _
    $region43: #{tpu_custom_call.1} parent=1 // pred_check_branch
      %502 = sbr.rel (0) target = $region45
    $region44: #{tpu_custom_call.1} parent=1 // pred_region
      %s504 = ssub.s32 128, 128
      %505 = vsyncadd [#allocation4], %s504
      %s507 = sshll.u32 [#allocation10], 4
      %s508 = int_to_ptr.vmem [resolvable:$true] %s507
      %510 = dma.vmem_to_hbm [thread:$0]  %s508, 128, %s6, [#allocation4]
    $region45: #{tpu_custom_call.1} parent=1 // pred_fallthru
      _
    // Predicated region
    $region46: #{tpu_custom_call.1} parent=1 // pred_check
      _
    $region47: #{tpu_custom_call.1} parent=1 // pred_check_branch
      %512 = sbr.rel (0) target = $region49
    $region48: #{tpu_custom_call.1} parent=1 // pred_region
      %513 = dma.done [#allocation4], 128
    $region49: #{tpu_custom_call.1} parent=1 // pred_fallthru
      _
    %514 = vsyncpa [#allocation3], 1
    %515 = vsyncpa [#allocation6], 1
    %516 = vsyncpa [#allocation9], 1
    %517 = vsyncpa [#allocation4], 1

// kernel: tpu_custom_call.1
$region0: #{tpu_custom_call.1}
  #allocation0 [shape = 'u32[]', space=smem, size = 0x4, offset = 0x4, fixed_abs, tag = 'smem constant byte address 0x4 - core index']
  #allocation1 [shape = 'u32[144,128]{1,0:T(1,128)}', space=vmem, size = 0x12000, scoped, tag = 'internal scratch']
  %s0 = inlined_call_operand.hbm [shape: f32[8,128], index: 0, kind: input, shape index: {}]
  %s1 = inlined_call_operand.hbm [shape: f32[8,128], index: 1, kind: input, shape index: {}]
  %s2 = inlined_call_operand.hbm [shape: f32[128,384], index: 2, kind: input, shape index: {}]
  %s3 = inlined_call_operand.hbm [shape: f32[128,384], index: 3, kind: input, shape index: {}]
  %s4 = inlined_call_operand.vmem [shape: f32[1,384], index: 4, kind: input, shape index: {}]
  %s5 = inlined_call_operand.vmem [shape: f32[1,128], index: 5, kind: input, shape index: {}]
  %s6 = inlined_call_operand.hbm [shape: f32[8,128], index: 6, kind: output, shape index: {}]
  %s7 = sld [smem:[#allocation0]]
  $region50: #{tpu_custom_call.1} parent=0
    _
  %s9 = ssub.s32 1, %s7
  %s10 = scalar_select 0, %s9, %s7
  $region1: #{tpu_custom_call.1} parent=0
    #allocation2 [shape = 'u8[4096]{0}', space=vmem, size = 0x1000, scoped, tag = 'input window, operand 0, single buffered']
    #allocation3 [shape = 's32[1]{0}', space=sflag, size = 0x4, scoped, tag = 'scoped memory for tpu_custom_call.1']
    #allocation4 [shape = 's32[1]{0}', space=sflag, size = 0x4, scoped, tag = 'scoped memory for tpu_custom_call.1']
    #allocation5 [shape = 'u8[4096]{0}', space=vmem, size = 0x1000, scoped, tag = 'input window, operand 1, single buffered']
    #allocation6 [shape = 's32[1]{0}', space=sflag, size = 0x4, scoped, tag = 'scoped memory for tpu_custom_call.1']
    #allocation7 [shape = 'u8[196608]{0}', space=vmem, size = 0x30000, scoped, tag = 'input window, operand 2, single buffered']
    #allocation8 [shape = 'u8[196608]{0}', space=vmem, size = 0x30000, scoped, tag = 'input window, operand 3, single buffered']
    #allocation9 [shape = 's32[1]{0}', space=sflag, size = 0x4, scoped, tag = 'scoped memory for tpu_custom_call.1']
    #allocation10 [shape = 'u8[4096]{0}', space=vmem, size = 0x1000, scoped, tag = 'output window, operand 0, single buffered']
    %11 = vsyncpa [#allocation3], 0
    %12 = vsyncpa [#allocation6], 0
    %13 = vsyncpa [#allocation9], 0
    %14 = vsyncpa [#allocation4], 0
    // Predicated region
    $region2: #{tpu_custom_call.1} parent=1 // pred_check
      _
    $region3: #{tpu_custom_call.1} parent=1 // pred_check_branch
      %16 = sbr.rel (0) target = $region5
    $region4: #{tpu_custom_call.1} parent=1 // pred_region
      %s18 = ssub.s32 128, 128
      %19 = vsyncadd [#allocation3], %s18
      %s21 = sshll.u32 [#allocation2], 4
      %s22 = int_to_ptr.vmem [resolvable:$true] %s21
      %24 = dma.hbm_to_vmem [thread:$0]  %s0, 128, %s22, [#allocation3]
    $region5: #{tpu_custom_call.1} parent=1 // pred_fallthru
      _
    // Predicated region
    $region6: #{tpu_custom_call.1} parent=1 // pred_check
      _
    $region7: #{tpu_custom_call.1} parent=1 // pred_check_branch
      %26 = sbr.rel (0) target = $region9
    $region8: #{tpu_custom_call.1} parent=1 // pred_region
      %s28 = ssub.s32 128, 128
      %29 = vsyncadd [#allocation6], %s28
      %s31 = sshll.u32 [#allocation5], 4
      %s32 = int_to_ptr.vmem [resolvable:$true] %s31
      %34 = dma.hbm_to_vmem [thread:$0]  %s1, 128, %s32, [#allocation6]
    $region9: #{tpu_custom_call.1} parent=1 // pred_fallthru
      _
    // Predicated region
    $region10: #{tpu_custom_call.1} parent=1 // pred_check
      _
    $region11: #{tpu_custom_call.1} parent=1 // pred_check_branch
      %36 = sbr.rel (0) target = $region13
    $region12: #{tpu_custom_call.1} parent=1 // pred_region
      %s38 = ssub.s32 6144, 6144
      %39 = vsyncadd [#allocation6], %s38
      %s40 = sshll.u32 [#allocation7], 4
      %s41 = int_to_ptr.vmem [resolvable:$true] %s40
      %46 = dma.hbm_to_vmem [thread:$0]  %s2, 6144, %s41, [#allocation6], 384, 384, 24
    $region13: #{tpu_custom_call.1} parent=1 // pred_fallthru
      _
    // Predicated region
    $region14: #{tpu_custom_call.1} parent=1 // pred_check
      _
    $region15: #{tpu_custom_call.1} parent=1 // pred_check_branch
      %48 = sbr.rel (0) target = $region17
    $region16: #{tpu_custom_call.1} parent=1 // pred_region
      %s50 = ssub.s32 6144, 6144
      %51 = vsyncadd [#allocation9], %s50
      %s52 = sshll.u32 [#allocation8], 4
      %s53 = int_to_ptr.vmem [resolvable:$true] %s52
      %58 = dma.hbm_to_vmem [thread:$0]  %s3, 6144, %s53, [#allocation9], 384, 384, 24
    $region17: #{tpu_custom_call.1} parent=1 // pred_fallthru
      _
    // Predicated region
    $region18: #{tpu_custom_call.1} parent=1 // pred_check
      _
    $region19: #{tpu_custom_call.1} parent=1 // pred_check_branch
      %60 = sbr.rel (0) target = $region21
    $region20: #{tpu_custom_call.1} parent=1 // pred_region
      _
    $region21: #{tpu_custom_call.1} parent=1 // pred_fallthru
      _
    // Predicated region
    $region22: #{tpu_custom_call.1} parent=1 // pred_check
      _
    $region23: #{tpu_custom_call.1} parent=1 // pred_check_branch
      %62 = sbr.rel (0) target = $region25
    $region24: #{tpu_custom_call.1} parent=1 // pred_region
      _
    $region25: #{tpu_custom_call.1} parent=1 // pred_fallthru
      _
    // Predicated region
    $region26: #{tpu_custom_call.1} parent=1 // pred_check
      _
    $region27: #{tpu_custom_call.1} parent=1 // pred_check_branch
      %64 = sbr.rel (0) target = $region29
    $region28: #{tpu_custom_call.1} parent=1 // pred_region
      %65 = dma.done [#allocation3], 128
    $region29: #{tpu_custom_call.1} parent=1 // pred_fallthru
      _
    // Predicated region
    $region30: #{tpu_custom_call.1} parent=1 // pred_check
      _
    $region31: #{tpu_custom_call.1} parent=1 // pred_check_branch
      %67 = sbr.rel (0) target = $region33
    $region32: #{tpu_custom_call.1} parent=1 // pred_region
      %68 = dma.done [#allocation6], 128
    $region33: #{tpu_custom_call.1} parent=1 // pred_fallthru
      _
    // Predicated region
    $region34: #{tpu_custom_call.1} parent=1 // pred_check
      _
    $region35: #{tpu_custom_call.1} parent=1 // pred_check_branch
      %70 = sbr.rel (0) target = $region37
    $region36: #{tpu_custom_call.1} parent=1 // pred_region
      %71 = dma.done [#allocation6], 6144
    $region37: #{tpu_custom_call.1} parent=1 // pred_fallthru
      _
    // Predicated region
    $region38: #{tpu_custom_call.1} parent=1 // pred_check
      _
    $region39: #{tpu_custom_call.1} parent=1 // pred_check_branch
      %73 = sbr.rel (0) target = $region41
    $region40: #{tpu_custom_call.1} parent=1 // pred_region
      %74 = dma.done [#allocation9], 6144
    $region41: #{tpu_custom_call.1} parent=1 // pred_fallthru
      _
    %v75 = vld [vmem:[#allocation5] sm:$0xff]
    %v76 = vld [vmem:[#allocation2] sm:$0xff]
    %v77 = vld [vmem:[#allocation7] sm:$0xff]
    %v78 = vld [vmem:[#allocation7 + $0x8] sm:$0xff]
    %v79 = vld [vmem:[#allocation7 + $0x10] sm:$0xff]
    %v80 = vld [vmem:[#allocation7 + $0x18] sm:$0xff]
    %v81 = vld [vmem:[#allocation7 + $0x20] sm:$0xff]
    %v82 = vld [vmem:[#allocation7 + $0x28] sm:$0xff]
    %v83 = vld [vmem:[#allocation7 + $0x30] sm:$0xff]
    %v84 = vld [vmem:[#allocation7 + $0x38] sm:$0xff]
    %v85 = vld [vmem:[#allocation7 + $0x40] sm:$0xff]
    %v86 = vld [vmem:[#allocation7 + $0x48] sm:$0xff]
    %v87 = vld [vmem:[#allocation7 + $0x50] sm:$0xff]
    %v88 = vld [vmem:[#allocation7 + $0x58] sm:$0xff]
    %v89 = vld [vmem:[#allocation7 + $0x60] sm:$0xff]
    %v90 = vld [vmem:[#allocation7 + $0x68] sm:$0xff]
    %v91 = vld [vmem:[#allocation7 + $0x70] sm:$0xff]
    %v92 = vld [vmem:[#allocation7 + $0x78] sm:$0xff]
    %v93 = vld [vmem:[#allocation7 + $0x80] sm:$0xff]
    %v94 = vld [vmem:[#allocation7 + $0x88] sm:$0xff]
    %v95 = vld [vmem:[#allocation7 + $0x90] sm:$0xff]
    %v96 = vld [vmem:[#allocation7 + $0x98] sm:$0xff]
    %v97 = vld [vmem:[#allocation7 + $0xa0] sm:$0xff]
    %v98 = vld [vmem:[#allocation7 + $0xa8] sm:$0xff]
    %v99 = vld [vmem:[#allocation7 + $0xb0] sm:$0xff]
    %v100 = vld [vmem:[#allocation7 + $0xb8] sm:$0xff]
    %v101 = vld [vmem:[#allocation7 + $0xc0] sm:$0xff]
    %v102 = vld [vmem:[#allocation7 + $0xc8] sm:$0xff]
    %v103 = vld [vmem:[#allocation7 + $0xd0] sm:$0xff]
    %v104 = vld [vmem:[#allocation7 + $0xd8] sm:$0xff]
    %v105 = vld [vmem:[#allocation7 + $0xe0] sm:$0xff]
    %v106 = vld [vmem:[#allocation7 + $0xe8] sm:$0xff]
    %v107 = vld [vmem:[#allocation7 + $0xf0] sm:$0xff]
    %v108 = vld [vmem:[#allocation7 + $0xf8] sm:$0xff]
    %v109 = vld [vmem:[#allocation7 + $0x100] sm:$0xff]
    %v110 = vld [vmem:[#allocation7 + $0x108] sm:$0xff]
    %v111 = vld [vmem:[#allocation7 + $0x110] sm:$0xff]
    %v112 = vld [vmem:[#allocation7 + $0x118] sm:$0xff]
    %v113 = vld [vmem:[#allocation7 + $0x120] sm:$0xff]
    %v114 = vld [vmem:[#allocation7 + $0x128] sm:$0xff]
    %v115 = vld [vmem:[#allocation7 + $0x130] sm:$0xff]
    %v116 = vld [vmem:[#allocation7 + $0x138] sm:$0xff]
    %v117 = vld [vmem:[#allocation7 + $0x140] sm:$0xff]
    %v118 = vld [vmem:[#allocation7 + $0x148] sm:$0xff]
    %v119 = vld [vmem:[#allocation7 + $0x150] sm:$0xff]
    %v120 = vld [vmem:[#allocation7 + $0x158] sm:$0xff]
    %v121 = vld [vmem:[#allocation7 + $0x160] sm:$0xff]
    %v122 = vld [vmem:[#allocation7 + $0x168] sm:$0xff]
    %v123 = vld [vmem:[#allocation7 + $0x170] sm:$0xff]
    %v124 = vld [vmem:[#allocation7 + $0x178] sm:$0xff]
    %v125 = vld [vmem:[#allocation8] sm:$0xff]
    %v126 = vld [vmem:[#allocation8 + $0x8] sm:$0xff]
    %v127 = vld [vmem:[#allocation8 + $0x10] sm:$0xff]
    %v128 = vld [vmem:[#allocation8 + $0x18] sm:$0xff]
    %v129 = vld [vmem:[#allocation8 + $0x20] sm:$0xff]
    %v130 = vld [vmem:[#allocation8 + $0x28] sm:$0xff]
    %v131 = vld [vmem:[#allocation8 + $0x30] sm:$0xff]
    %v132 = vld [vmem:[#allocation8 + $0x38] sm:$0xff]
    %v133 = vld [vmem:[#allocation8 + $0x40] sm:$0xff]
    %v134 = vld [vmem:[#allocation8 + $0x48] sm:$0xff]
    %v135 = vld [vmem:[#allocation8 + $0x50] sm:$0xff]
    %v136 = vld [vmem:[#allocation8 + $0x58] sm:$0xff]
    %v137 = vld [vmem:[#allocation8 + $0x60] sm:$0xff]
    %v138 = vld [vmem:[#allocation8 + $0x68] sm:$0xff]
    %v139 = vld [vmem:[#allocation8 + $0x70] sm:$0xff]
    %v140 = vld [vmem:[#allocation8 + $0x78] sm:$0xff]
    %v141 = vld [vmem:[#allocation8 + $0x80] sm:$0xff]
    %v142 = vld [vmem:[#allocation8 + $0x88] sm:$0xff]
    %v143 = vld [vmem:[#allocation8 + $0x90] sm:$0xff]
    %v144 = vld [vmem:[#allocation8 + $0x98] sm:$0xff]
    %v145 = vld [vmem:[#allocation8 + $0xa0] sm:$0xff]
    %v146 = vld [vmem:[#allocation8 + $0xa8] sm:$0xff]
    %v147 = vld [vmem:[#allocation8 + $0xb0] sm:$0xff]
    %v148 = vld [vmem:[#allocation8 + $0xb8] sm:$0xff]
    %v149 = vld [vmem:[#allocation8 + $0xc0] sm:$0xff]
    %v150 = vld [vmem:[#allocation8 + $0xc8] sm:$0xff]
    %v151 = vld [vmem:[#allocation8 + $0xd0] sm:$0xff]
    %v152 = vld [vmem:[#allocation8 + $0xd8] sm:$0xff]
    %v153 = vld [vmem:[#allocation8 + $0xe0] sm:$0xff]
    %v154 = vld [vmem:[#allocation8 + $0xe8] sm:$0xff]
    %v155 = vld [vmem:[#allocation8 + $0xf0] sm:$0xff]
    %v156 = vld [vmem:[#allocation8 + $0xf8] sm:$0xff]
    %v157 = vld [vmem:[#allocation8 + $0x100] sm:$0xff]
    %v158 = vld [vmem:[#allocation8 + $0x108] sm:$0xff]
    %v159 = vld [vmem:[#allocation8 + $0x110] sm:$0xff]
    %v160 = vld [vmem:[#allocation8 + $0x118] sm:$0xff]
    %v161 = vld [vmem:[#allocation8 + $0x120] sm:$0xff]
    %v162 = vld [vmem:[#allocation8 + $0x128] sm:$0xff]
    %v163 = vld [vmem:[#allocation8 + $0x130] sm:$0xff]
    %v164 = vld [vmem:[#allocation8 + $0x138] sm:$0xff]
    %v165 = vld [vmem:[#allocation8 + $0x140] sm:$0xff]
    %v166 = vld [vmem:[#allocation8 + $0x148] sm:$0xff]
    %v167 = vld [vmem:[#allocation8 + $0x150] sm:$0xff]
    %v168 = vld [vmem:[#allocation8 + $0x158] sm:$0xff]
    %v169 = vld [vmem:[#allocation8 + $0x160] sm:$0xff]
    %v170 = vld [vmem:[#allocation8 + $0x168] sm:$0xff]
    %v171 = vld [vmem:[#allocation8 + $0x170] sm:$0xff]
    %v172 = vld [vmem:[#allocation8 + $0x178] sm:$0xff]
    %v173 = vld [vmem:[%s4] sm:$0x7]
    %v174 = vld [vmem:[%s5] sm:$0x1]
    %v176 = vlaneseq
    %v177 = vshrl.u32 %v176, 7
    %v178 = vsub.s32 0, %v177
    %v179 = vrot.slane %v173, %v178
    %v180 = vlaneseq
    %v181 = vshrl.u32 %v180, 7
    %v182 = vsub.s32 1, %v181
    %v183 = vrot.slane %v173, %v182
    %v184 = vlaneseq
    %v185 = vshrl.u32 %v184, 7
    %v186 = vsub.s32 2, %v185
    %v187 = vrot.slane %v173, %v186
    %191 = vmatprep.subr.mxu0 %v123
    %192 = vmatpush1.msra.mxu0 %v122
    %193 = vmatprep.subr.mxu0 %v120
    %194 = vmatpush1.msra.mxu0 %v119
    %195 = vmatprep.subr.mxu0 %v117
    %196 = vmatpush1.msra.mxu0 %v116
    %197 = vmatprep.subr.mxu0 %v114
    %198 = vmatpush1.msra.mxu0 %v113
    %199 = vmatprep.subr.mxu0 %v111
    %200 = vmatpush1.msra.mxu0 %v110
    %201 = vmatprep.subr.mxu0 %v108
    %202 = vmatpush1.msra.mxu0 %v107
    %203 = vmatprep.subr.mxu0 %v105
    %204 = vmatpush1.msra.mxu0 %v104
    %205 = vmatprep.subr.mxu0 %v102
    %206 = vmatpush1.msra.mxu0 %v101
    %207 = vmatprep.subr.mxu0 %v99
    %208 = vmatpush1.msra.mxu0 %v98
    %209 = vmatprep.subr.mxu0 %v96
    %210 = vmatpush1.msra.mxu0 %v95
    %211 = vmatprep.subr.mxu0 %v93
    %212 = vmatpush1.msra.mxu0 %v92
    %213 = vmatprep.subr.mxu0 %v90
    %214 = vmatpush1.msra.mxu0 %v89
    %215 = vmatprep.subr.mxu0 %v87
    %216 = vmatpush1.msra.mxu0 %v86
    %217 = vmatprep.subr.mxu0 %v84
    %218 = vmatpush1.msra.mxu0 %v83
    %219 = vmatprep.subr.mxu0 %v81
    %220 = vmatpush1.msra.mxu0 %v80
    %221 = vmatprep.subr.mxu0 %v78
    %222 = vmatpush1.msra.mxu0 %v77
    %223 = vmatprep.subr.mxu0 0.0
    %224 = vmatpush2.msra.mxu0 0.0
    %225 = vmatprep.subr.mxu0 0.0
    %226 = vmatpush2.msra.mxu0 0.0
    %227 = vmatprep.subr.mxu0 0.0
    %228 = vmatpush2.msra.mxu0 0.0
    %229 = vmatprep.subr.mxu0 0.0
    %230 = vmatpush2.msra.mxu0 0.0
    %231 = vmatprep.subr.mxu0 0.0
    %232 = vmatpush2.msra.mxu0 0.0
    %233 = vmatprep.subr.mxu0 0.0
    %234 = vmatpush2.msra.mxu0 0.0
    %235 = vmatprep.subr.mxu0 0.0
    %236 = vmatpush2.msra.mxu0 0.0
    %237 = vmatprep.subr.mxu0 0.0
    %238 = vmatpush2.msra.mxu0 0.0
    %239 = vmatprep.subr.mxu0 0.0
    %240 = vmatpush2.msra.mxu0 0.0
    %241 = vmatprep.subr.mxu0 0.0
    %242 = vmatpush2.msra.mxu0 0.0
    %243 = vmatprep.subr.mxu0 0.0
    %244 = vmatpush2.msra.mxu0 0.0
    %245 = vmatprep.subr.mxu0 0.0
    %246 = vmatpush2.msra.mxu0 0.0
    %247 = vmatprep.subr.mxu0 0.0
    %248 = vmatpush2.msra.mxu0 0.0
    %249 = vmatprep.subr.mxu0 0.0
    %250 = vmatpush2.msra.mxu0 0.0
    %251 = vmatprep.subr.mxu0 0.0
    %252 = vmatpush2.msra.mxu0 0.0
    %253 = vmatprep.subr.mxu0 0.0
    %254 = vmatpush2.msra.mxu0 0.0
    %255 = vmatprep.mubr.f32.mxu0 0.0
    %256 = vmatmul.mubr.f32.gmra.mxu0 %v76
    %v257 = vpop.f32.mrf.mxu0
    %v258 = vadd.f32 %v179, %v257
    %v259 = vpop.f32.mrf.mxu0
    %v260 = vadd.f32 %v183, %v259
    %261 = vdwg.mxu0
    %262 = vmatprep.subr.mxu0 0.0
    %263 = vmatpush1.msra.mxu0 %v124
    %264 = vmatprep.subr.mxu0 0.0
    %265 = vmatpush1.msra.mxu0 %v121
    %266 = vmatprep.subr.mxu0 0.0
    %267 = vmatpush1.msra.mxu0 %v118
    %268 = vmatprep.subr.mxu0 0.0
    %269 = vmatpush1.msra.mxu0 %v115
    %270 = vmatprep.subr.mxu0 0.0
    %271 = vmatpush1.msra.mxu0 %v112
    %272 = vmatprep.subr.mxu0 0.0
    %273 = vmatpush1.msra.mxu0 %v109
    %274 = vmatprep.subr.mxu0 0.0
    %275 = vmatpush1.msra.mxu0 %v106
    %276 = vmatprep.subr.mxu0 0.0
    %277 = vmatpush1.msra.mxu0 %v103
    %278 = vmatprep.subr.mxu0 0.0
    %279 = vmatpush1.msra.mxu0 %v100
    %280 = vmatprep.subr.mxu0 0.0
    %281 = vmatpush1.msra.mxu0 %v97
    %282 = vmatprep.subr.mxu0 0.0
    %283 = vmatpush1.msra.mxu0 %v94
    %284 = vmatprep.subr.mxu0 0.0
    %285 = vmatpush1.msra.mxu0 %v91
    %286 = vmatprep.subr.mxu0 0.0
    %287 = vmatpush1.msra.mxu0 %v88
    %288 = vmatprep.subr.mxu0 0.0
    %289 = vmatpush1.msra.mxu0 %v85
    %290 = vmatprep.subr.mxu0 0.0
    %291 = vmatpush1.msra.mxu0 %v82
    %292 = vmatprep.subr.mxu0 0.0
    %293 = vmatpush1.msra.mxu0 %v79
    %294 = vmatprep.subr.mxu0 0.0
    %295 = vmatpush2.msra.mxu0 0.0
    %296 = vmatprep.subr.mxu0 0.0
    %297 = vmatpush2.msra.mxu0 0.0
    %298 = vmatprep.subr.mxu0 0.0
    %299 = vmatpush2.msra.mxu0 0.0
    %300 = vmatprep.subr.mxu0 0.0
    %301 = vmatpush2.msra.mxu0 0.0
    %302 = vmatprep.subr.mxu0 0.0
    %303 = vmatpush2.msra.mxu0 0.0
    %304 = vmatprep.subr.mxu0 0.0
    %305 = vmatpush2.msra.mxu0 0.0
    %306 = vmatprep.subr.mxu0 0.0
    %307 = vmatpush2.msra.mxu0 0.0
    %308 = vmatprep.subr.mxu0 0.0
    %309 = vmatpush2.msra.mxu0 0.0
    %310 = vmatprep.subr.mxu0 0.0
    %311 = vmatpush2.msra.mxu0 0.0
    %312 = vmatprep.subr.mxu0 0.0
    %313 = vmatpush2.msra.mxu0 0.0
    %314 = vmatprep.subr.mxu0 0.0
    %315 = vmatpush2.msra.mxu0 0.0
    %316 = vmatprep.subr.mxu0 0.0
    %317 = vmatpush2.msra.mxu0 0.0
    %318 = vmatprep.subr.mxu0 0.0
    %319 = vmatpush2.msra.mxu0 0.0
    %320 = vmatprep.subr.mxu0 0.0
    %321 = vmatpush2.msra.mxu0 0.0
    %322 = vmatprep.subr.mxu0 0.0
    %323 = vmatpush2.msra.mxu0 0.0
    %324 = vmatprep.subr.mxu0 0.0
    %325 = vmatpush2.msra.mxu0 0.0
    %326 = vmatprep.mubr.f32.mxu0 0.0
    %327 = vmatmul.mubr.f32.gmra.mxu0 %v76
    %v328 = vpop.f32.mrf.mxu0
    %v329 = vadd.f32 %v187, %v328
    %v330 = vpop.f32.mrf.mxu0
    %331 = vdwg.mxu0
    %332 = vmatprep.subr.mxu0 %v171
    %333 = vmatpush1.msra.mxu0 %v170
    %334 = vmatprep.subr.mxu0 %v168
    %335 = vmatpush1.msra.mxu0 %v167
    %336 = vmatprep.subr.mxu0 %v165
    %337 = vmatpush1.msra.mxu0 %v164
    %338 = vmatprep.subr.mxu0 %v162
    %339 = vmatpush1.msra.mxu0 %v161
    %340 = vmatprep.subr.mxu0 %v159
    %341 = vmatpush1.msra.mxu0 %v158
    %342 = vmatprep.subr.mxu0 %v156
    %343 = vmatpush1.msra.mxu0 %v155
    %344 = vmatprep.subr.mxu0 %v153
    %345 = vmatpush1.msra.mxu0 %v152
    %346 = vmatprep.subr.mxu0 %v150
    %347 = vmatpush1.msra.mxu0 %v149
    %348 = vmatprep.subr.mxu0 %v147
    %349 = vmatpush1.msra.mxu0 %v146
    %350 = vmatprep.subr.mxu0 %v144
    %351 = vmatpush1.msra.mxu0 %v143
    %352 = vmatprep.subr.mxu0 %v141
    %353 = vmatpush1.msra.mxu0 %v140
    %354 = vmatprep.subr.mxu0 %v138
    %355 = vmatpush1.msra.mxu0 %v137
    %356 = vmatprep.subr.mxu0 %v135
    %357 = vmatpush1.msra.mxu0 %v134
    %358 = vmatprep.subr.mxu0 %v132
    %359 = vmatpush1.msra.mxu0 %v131
    %360 = vmatprep.subr.mxu0 %v129
    %361 = vmatpush1.msra.mxu0 %v128
    %362 = vmatprep.subr.mxu0 %v126
    %363 = vmatpush1.msra.mxu0 %v125
    %364 = vmatprep.subr.mxu0 0.0
    %365 = vmatpush2.msra.mxu0 0.0
    %366 = vmatprep.subr.mxu0 0.0
    %367 = vmatpush2.msra.mxu0 0.0
    %368 = vmatprep.subr.mxu0 0.0
    %369 = vmatpush2.msra.mxu0 0.0
    %370 = vmatprep.subr.mxu0 0.0
    %371 = vmatpush2.msra.mxu0 0.0
    %372 = vmatprep.subr.mxu0 0.0
    %373 = vmatpush2.msra.mxu0 0.0
    %374 = vmatprep.subr.mxu0 0.0
    %375 = vmatpush2.msra.mxu0 0.0
    %376 = vmatprep.subr.mxu0 0.0
    %377 = vmatpush2.msra.mxu0 0.0
    %378 = vmatprep.subr.mxu0 0.0
    %379 = vmatpush2.msra.mxu0 0.0
    %380 = vmatprep.subr.mxu0 0.0
    %381 = vmatpush2.msra.mxu0 0.0
    %382 = vmatprep.subr.mxu0 0.0
    %383 = vmatpush2.msra.mxu0 0.0
    %384 = vmatprep.subr.mxu0 0.0
    %385 = vmatpush2.msra.mxu0 0.0
    %386 = vmatprep.subr.mxu0 0.0
    %387 = vmatpush2.msra.mxu0 0.0
    %388 = vmatprep.subr.mxu0 0.0
    %389 = vmatpush2.msra.mxu0 0.0
    %390 = vmatprep.subr.mxu0 0.0
    %391 = vmatpush2.msra.mxu0 0.0
    %392 = vmatprep.subr.mxu0 0.0
    %393 = vmatpush2.msra.mxu0 0.0
    %394 = vmatprep.subr.mxu0 0.0
    %395 = vmatpush2.msra.mxu0 0.0
    %396 = vmatprep.mubr.f32.mxu0 0.0
    %397 = vmatmul.mubr.f32.gmra.mxu0 %v75
    %v398 = vpop.f32.mrf.mxu0
    %v399 = vadd.f32 0.0, %v398
    %v400 = vpop.f32.mrf.mxu0
    %v401 = vadd.f32 0.0, %v400
    %402 = vdwg.mxu0
    %403 = vmatprep.subr.mxu0 0.0
    %404 = vmatpush1.msra.mxu0 %v172
    %405 = vmatprep.subr.mxu0 0.0
    %406 = vmatpush1.msra.mxu0 %v169
    %407 = vmatprep.subr.mxu0 0.0
    %408 = vmatpush1.msra.mxu0 %v166
    %409 = vmatprep.subr.mxu0 0.0
    %410 = vmatpush1.msra.mxu0 %v163
    %411 = vmatprep.subr.mxu0 0.0
    %412 = vmatpush1.msra.mxu0 %v160
    %413 = vmatprep.subr.mxu0 0.0
    %414 = vmatpush1.msra.mxu0 %v157
    %415 = vmatprep.subr.mxu0 0.0
    %416 = vmatpush1.msra.mxu0 %v154
    %417 = vmatprep.subr.mxu0 0.0
    %418 = vmatpush1.msra.mxu0 %v151
    %419 = vmatprep.subr.mxu0 0.0
    %420 = vmatpush1.msra.mxu0 %v148
    %421 = vmatprep.subr.mxu0 0.0
    %422 = vmatpush1.msra.mxu0 %v145
    %423 = vmatprep.subr.mxu0 0.0
    %424 = vmatpush1.msra.mxu0 %v142
    %425 = vmatprep.subr.mxu0 0.0
    %426 = vmatpush1.msra.mxu0 %v139
    %427 = vmatprep.subr.mxu0 0.0
    %428 = vmatpush1.msra.mxu0 %v136
    %429 = vmatprep.subr.mxu0 0.0
    %430 = vmatpush1.msra.mxu0 %v133
    %431 = vmatprep.subr.mxu0 0.0
    %432 = vmatpush1.msra.mxu0 %v130
    %433 = vmatprep.subr.mxu0 0.0
    %434 = vmatpush1.msra.mxu0 %v127
    %435 = vmatprep.subr.mxu0 0.0
    %436 = vmatpush2.msra.mxu0 0.0
    %437 = vmatprep.subr.mxu0 0.0
    %438 = vmatpush2.msra.mxu0 0.0
    %439 = vmatprep.subr.mxu0 0.0
    %440 = vmatpush2.msra.mxu0 0.0
    %441 = vmatprep.subr.mxu0 0.0
    %442 = vmatpush2.msra.mxu0 0.0
    %443 = vmatprep.subr.mxu0 0.0
    %444 = vmatpush2.msra.mxu0 0.0
    %445 = vmatprep.subr.mxu0 0.0
    %446 = vmatpush2.msra.mxu0 0.0
    %447 = vmatprep.subr.mxu0 0.0
    %448 = vmatpush2.msra.mxu0 0.0
    %449 = vmatprep.subr.mxu0 0.0
    %450 = vmatpush2.msra.mxu0 0.0
    %451 = vmatprep.subr.mxu0 0.0
    %452 = vmatpush2.msra.mxu0 0.0
    %453 = vmatprep.subr.mxu0 0.0
    %454 = vmatpush2.msra.mxu0 0.0
    %455 = vmatprep.subr.mxu0 0.0
    %456 = vmatpush2.msra.mxu0 0.0
    %457 = vmatprep.subr.mxu0 0.0
    %458 = vmatpush2.msra.mxu0 0.0
    %459 = vmatprep.subr.mxu0 0.0
    %460 = vmatpush2.msra.mxu0 0.0
    %461 = vmatprep.subr.mxu0 0.0
    %462 = vmatpush2.msra.mxu0 0.0
    %463 = vmatprep.subr.mxu0 0.0
    %464 = vmatpush2.msra.mxu0 0.0
    %465 = vmatprep.subr.mxu0 0.0
    %466 = vmatpush2.msra.mxu0 0.0
    %467 = vmatprep.mubr.f32.mxu0 0.0
    %468 = vmatmul.mubr.f32.gmra.mxu0 %v75
    %v469 = vpop.f32.mrf.mxu0
    %v470 = vadd.f32 0.0, %v469
    %v471 = vpop.f32.mrf.mxu0
    %472 = vdwg.mxu0
    %v473 = vadd.f32 %v258, %v399
    %v474 = vadd.f32 %v260, %v401
    %v475 = vxor.u32 %v473, 2147483648
    %v476 = vxor.u32 %v474, 2147483648
    %v477 = vmul.f32 %v475, 1.442695
    %v478 = vpow.pop %v477
    %v479 = vmul.f32 %v476, 1.442695
    %v480 = vpow.pop %v479
    %v481 = vadd.f32 %v478, 1.0
    %v482 = vadd.f32 %v480, 1.0
    %v483 = vrcp.pop %v481
    %v484 = vmul.f32 1.0, %v483
    %v485 = vrcp.pop %v482
    %v486 = vmul.f32 1.0, %v485
    %v487 = vadd.f32 %v329, %v484
    %v489 = vlaneseq
    %v490 = vshrl.u32 %v489, 7
    %v491 = vsub.s32 0, %v490
    %v492 = vrot.slane %v174, %v491
    %v494 = vadd.f32 %v470, %v492
    %v495 = vmul.f32 %v487, %v494
    %v496 = vtanh.pop %v495
    %v497 = vsub.f32 %v75, %v496
    %v498 = vmul.f32 %v486, %v497
    %v499 = vadd.f32 %v496, %v498
    %500 = vst [vmem:[#allocation10] sm:$0xff] %v499
    // Predicated region
    $region42: #{tpu_custom_call.1} parent=1 // pred_check
      _
    $region43: #{tpu_custom_call.1} parent=1 // pred_check_branch
      %502 = sbr.rel (0) target = $region45
    $region44: #{tpu_custom_call.1} parent=1 // pred_region
      %s504 = ssub.s32 128, 128
      %505 = vsyncadd [#allocation4], %s504
      %s507 = sshll.u32 [#allocation10], 4
      %s508 = int_to_ptr.vmem [resolvable:$true] %s507
      %510 = dma.vmem_to_hbm [thread:$0]  %s508, 128, %s6, [#allocation4]
    $region45: #{tpu_custom_call.1} parent=1 // pred_fallthru
      _
    // Predicated region
    $region46: #{tpu_custom_call.1} parent=1 // pred_check
      _
    $region47: #{tpu_custom_call.1} parent=1 // pred_check_branch
      %512 = sbr.rel (0) target = $region49
    $region48: #{tpu_custom_call.1} parent=1 // pred_region
      %513 = dma.done [#allocation4], 128
    $region49: #{tpu_custom_call.1} parent=1 // pred_fallthru
      _
    %514 = vsyncpa [#allocation3], 1
    %515 = vsyncpa [#allocation6], 1
    %516 = vsyncpa [#allocation9], 1
    %517 = vsyncpa [#allocation4], 1

</llo_original>
